<compile_context>
chip_gen: v7x
topology: tpu7x:2x2x1
jax: 0.10.0
libtpu: 0.0.40
codegen_flags: <defaults>
</compile_context>

<pallas_src>
import jax
import jax.numpy as jnp
from jax.experimental import pallas as pl
from jax.experimental.pallas import tpu as pltpu


def _round_up(v, m):
    return -(-v // m) * m


def _make_conv_relu_kernel(C, KH, KW, sh, sw, TH, OW_pad, OCp):
    """Builds the kernel body (all shape params are static Python ints)."""
    M_TILE = TH * OW_pad
    h_span = (TH - 1) * sh + 1
    w_span = (OW_pad - 1) * sw + 1

    def kernel(x_ref, w_ref, b_ref, o_ref, acc_ref):
        # x_ref : (1, Hpp, Wpp, C)   full padded image for this batch element
        # w_ref : (KH*KW, C, OCp)    resident weights (taps major)
        # b_ref : (1, OCp)
        # o_ref : (1, M_TILE, OCp)   lane-dense output tile (TH output rows)
        # acc_ref: (M_TILE, OCp) f32 VMEM accumulator
        t = pl.program_id(1)
        row0 = pl.multiple_of(t * (TH * sh), TH * sh)

        # Accumulate the KH*KW taps: each tap is a K=C matmul on the MXU.
        for ki in range(KH):
            for kj in range(KW):
                win = x_ref[0, pl.ds(row0 + ki, h_span), kj:kj + w_span, :]
                if sh > 1 or sw > 1:
                    win = win[::sh, ::sw, :]          # (TH, OW_pad, C)
                lhs = win.reshape(M_TILE, C)          # sublane-tile merge
                contrib = jnp.dot(lhs, w_ref[ki * KW + kj],
                                  preferred_element_type=jnp.float32)
                if ki == 0 and kj == 0:
                    acc_ref[...] = contrib
                else:
                    acc_ref[...] += contrib

        out = jnp.maximum(acc_ref[...] + b_ref[...], 0.0)
        o_ref[0] = out.astype(o_ref.dtype)

    return kernel


def conv_relu(x, w, b, stride=(1, 1), padding=(0, 0), row_tile_rows=512,
              vmem_budget_bytes=12 * 1024 * 1024):
    """Conv2d(stride, padding, no dilation/groups) + ReLU.

    x: (N, C, H, W)   w: (OC, C, KH, KW)   b: (OC,)   returns (N, OC, OH, OW)
    """
    N, C, H, W = x.shape
    OC, C2, KH, KW = w.shape
    assert C2 == C
    sh, sw = stride
    ph, pw = padding

    OH = (H + 2 * ph - KH) // sh + 1
    OW = (W + 2 * pw - KW) // sw + 1

    OCp = _round_up(OC, 128)     # lane-dense output columns / MXU N dim
    OW_pad = _round_up(OW, 8)    # sublane-aligned output rows per image line
    esize = jnp.dtype(x.dtype).itemsize

    # --- choose TH (output rows per grid step): target ~row_tile_rows rows of
    # M per tile, shrunk to respect a conservative VMEM budget (double-buffered
    # input image + output tile, resident weights, f32 accumulator).  The
    # budget is conservative enough for v7x's smaller VMEM / default scoped
    # limits on all chips.
    def vmem_estimate(th):
        oh_pad = _round_up(OH, th)
        hpp = max((oh_pad - 1) * sh + KH, H + 2 * ph)
        wpp = max((OW_pad - 1) * sw + KW, W + 2 * pw)
        x_blk = hpp * _round_up(wpp, 8) * _round_up(C, 128) * esize
        w_blk = KH * KW * _round_up(C, 8) * OCp * esize
        o_blk = th * OW_pad * OCp * esize
        acc = th * OW_pad * OCp * 4
        return 2 * x_blk + w_blk + 2 * o_blk + acc + OCp * 4

    TH = max(1, min(OH, max(1, row_tile_rows // OW_pad)))
    while TH > 1 and vmem_estimate(TH) > vmem_budget_bytes:
        TH -= 1
    # TODO(synk): for very large spatial inputs even TH=1 may exceed the
    # budget (whole-image residency); a halo-tiled / manual-DMA input path
    # would be needed there.

    OH_pad = _round_up(OH, TH)
    n_row_tiles = OH_pad // TH
    M_TILE = TH * OW_pad

    # Padded image extents so every window the kernel slices (including the
    # garbage rows/cols from OH_pad/OW_pad rounding) stays in-bounds.
    Hpp = max((OH_pad - 1) * sh + KH, H + 2 * ph)
    Wpp = max((OW_pad - 1) * sw + KW, W + 2 * pw)

    # NCHW -> NHWC (channels on lanes) + zero padding (conv padding plus the
    # bottom/right slack created by the row/col rounding above).
    xh = jnp.transpose(x, (0, 2, 3, 1))
    xp = jnp.pad(xh, ((0, 0), (ph, Hpp - H - ph), (pw, Wpp - W - pw), (0, 0)))

    # Weights: (OC, C, KH, KW) -> (KH*KW, C, OCp), taps major, OC padded.
    w3 = jnp.transpose(w, (2, 3, 1, 0)).reshape(KH * KW, C, OC)
    w3 = jnp.pad(w3, ((0, 0), (0, 0), (0, OCp - OC))).astype(x.dtype)
    b2 = jnp.pad(b, (0, OCp - OC)).reshape(1, OCp).astype(x.dtype)

    kernel = _make_conv_relu_kernel(C, KH, KW, sh, sw, TH, OW_pad, OCp)

    out3 = pl.pallas_call(
        kernel,
        out_shape=jax.ShapeDtypeStruct((N, OH_pad * OW_pad, OCp), x.dtype),
        grid=(N, n_row_tiles),
        in_specs=[
            # Whole padded image per batch element; resident across row tiles.
            pl.BlockSpec((1, Hpp, Wpp, C), lambda n, t: (n, 0, 0, 0)),
            # Weights / bias resident for the whole grid.
            pl.BlockSpec((KH * KW, C, OCp), lambda n, t: (0, 0, 0)),
            pl.BlockSpec((1, OCp), lambda n, t: (0, 0)),
        ],
        out_specs=pl.BlockSpec((1, M_TILE, OCp), lambda n, t: (n, t, 0)),
        scratch_shapes=[pltpu.VMEM((M_TILE, OCp), jnp.float32)],
        compiler_params=pltpu.CompilerParams(
            dimension_semantics=("parallel", "parallel")),
    )(xp, w3, b2)

    out = out3.reshape(N, OH_pad, OW_pad, OCp)[:, :OH, :OW, :OC]
    # NCHW to match the PyTorch module's output layout.
    # TODO(synk): keep NHWC if the downstream consumer accepts it, to avoid
    # this extra HBM round-trip.
    return jnp.transpose(out, (0, 3, 1, 2))


if __name__ == "__main__":
    # Small, self-consistent ConvReLU config:
    # Conv2d(in_ch=4, out_ch=8, kernel_size=3, stride=1, padding=0) + ReLU.
    N, C, H, W = 2, 4, 16, 16
    OC, KH, KW = 8, 3, 3

    key = jax.random.PRNGKey(0)
    kx, kw, kb = jax.random.split(key, 3)
    x = jax.random.normal(kx, (N, C, H, W), dtype=jnp.float32)
    fan_in = C * KH * KW
    bound = 1.0 / (fan_in ** 0.5)
    weight = jax.random.uniform(kw, (OC, C, KH, KW), jnp.float32, -bound, bound)
    bias = jax.random.uniform(kb, (OC,), jnp.float32, -bound, bound)

    # row_tile_rows=64 forces several row tiles even at this small size so the
    # tiled-grid path (the one used at real layer shapes) is exercised.
    out = conv_relu(x, weight, bias, stride=(1, 1), padding=(0, 0),
                    row_tile_rows=64)
    out = jax.block_until_ready(out)

    # Reference check with XLA's conv (not part of the kernel).
    ref = jax.lax.conv_general_dilated(
        x, weight, window_strides=(1, 1), padding="VALID",
        dimension_numbers=("NCHW", "OIHW", "NCHW"))
    ref = jnp.maximum(ref + bias.reshape(1, OC, 1, 1), 0.0)

    assert out.shape == (N, OC, H - KH + 1, W - KW + 1), out.shape
    assert jnp.allclose(out, ref, atol=1e-4, rtol=1e-4), (
        float(jnp.max(jnp.abs(out - ref))))
    print("KERNEL_OK")
</pallas_src>

<mosaic_0001>
module attributes {stable_mosaic.version = 11 : i64} {
  func.func @kernel(%arg0: i32, %arg1: i32, %arg2: memref<1x18x18x4xf32, #tpu.memory_space<vmem>>, %arg3: memref<9x4x128xf32, #tpu.memory_space<vmem>>, %arg4: memref<1x128xf32, #tpu.memory_space<vmem>>, %arg5: memref<1x64x128xf32, #tpu.memory_space<vmem>>, %arg6: memref<64x128xf32, #tpu.memory_space<vmem>>) attributes {dimension_semantics = [#tpu.dimension_semantics<parallel>, #tpu.dimension_semantics<parallel>], iteration_bounds = array<i64: 2, 4>, scalar_prefetch = 0 : i64, scratch_operands = 1 : i64, tpu.core_type = #tpu.core_type<tc>, window_params = [{transform_indices = @transform_0, window_bounds = array<i64: 1, 18, 18, 4>}, {pipeline_mode = #tpu.pipeline_mode<synchronous>, transform_indices = @transform_1, window_bounds = array<i64: 9, 4, 128>}, {pipeline_mode = #tpu.pipeline_mode<synchronous>, transform_indices = @transform_2, window_bounds = array<i64: 1, 128>}, {transform_indices = @transform_3, window_bounds = array<i64: 1, 64, 128>}]} {
    %c4_i32 = arith.constant 4 : i32
    %0 = arith.muli %arg1, %c4_i32 : i32
    %1 = tpu.assume_multiple %0, 4 : i32
    %c0_i32 = arith.constant 0 : i32
    %2 = arith.addi %1, %c0_i32 : i32
    %c0 = arith.constant 0 : index
    %3 = arith.index_cast %2 : i32 to index
    %c0_0 = arith.constant 0 : index
    %c0_1 = arith.constant 0 : index
    %4 = vector.load %arg2[%c0, %3, %c0_0, %c0_1] : memref<1x18x18x4xf32, #tpu.memory_space<vmem>>, vector<1x4x16x4xf32>
    %5 = vector.shape_cast %4 : vector<1x4x16x4xf32> to vector<4x16x4xf32>
    %6 = vector.shape_cast %5 : vector<4x16x4xf32> to vector<64x4xf32>
    %c0_2 = arith.constant 0 : index
    %c0_3 = arith.constant 0 : index
    %c0_4 = arith.constant 0 : index
    %7 = vector.load %arg3[%c0_2, %c0_3, %c0_4] : memref<9x4x128xf32, #tpu.memory_space<vmem>>, vector<1x4x128xf32>
    %8 = vector.shape_cast %7 : vector<1x4x128xf32> to vector<4x128xf32>
    %cst = arith.constant dense<0.000000e+00> : vector<64x128xf32>
    %9 = tpu.matmul %6, %8, %cst {dimension_numbers = #tpu.dot_dimension_numbers<[1], [0], [0], [1], [0, 0, 1, 1], [], []>} : vector<64x4xf32>, vector<4x128xf32>, vector<64x128xf32> -> vector<64x128xf32>
    %c0_5 = arith.constant 0 : index
    %c0_6 = arith.constant 0 : index
    %10 = vector.load %arg6[%c0_5, %c0_6] : memref<64x128xf32, #tpu.memory_space<vmem>>, vector<64x128xf32>
    tpu.vector_store %arg6[%c0_5, %c0_6], %9 {strides = array<i32>} : memref<64x128xf32, #tpu.memory_space<vmem>>, vector<64x128xf32>,
    %c0_i32_7 = arith.constant 0 : i32
    %11 = arith.addi %1, %c0_i32_7 : i32
    %c0_8 = arith.constant 0 : index
    %12 = arith.index_cast %11 : i32 to index
    %c1 = arith.constant 1 : index
    %c0_9 = arith.constant 0 : index
    %13 = vector.load %arg2[%c0_8, %12, %c1, %c0_9] : memref<1x18x18x4xf32, #tpu.memory_space<vmem>>, vector<1x4x16x4xf32>
    %14 = vector.shape_cast %13 : vector<1x4x16x4xf32> to vector<4x16x4xf32>
    %15 = vector.shape_cast %14 : vector<4x16x4xf32> to vector<64x4xf32>
    %c1_10 = arith.constant 1 : index
    %c0_11 = arith.constant 0 : index
    %c0_12 = arith.constant 0 : index
    %16 = vector.load %arg3[%c1_10, %c0_11, %c0_12] : memref<9x4x128xf32, #tpu.memory_space<vmem>>, vector<1x4x128xf32>
    %17 = vector.shape_cast %16 : vector<1x4x128xf32> to vector<4x128xf32>
    %cst_13 = arith.constant dense<0.000000e+00> : vector<64x128xf32>
    %18 = tpu.matmul %15, %17, %cst_13 {dimension_numbers = #tpu.dot_dimension_numbers<[1], [0], [0], [1], [0, 0, 1, 1], [], []>} : vector<64x4xf32>, vector<4x128xf32>, vector<64x128xf32> -> vector<64x128xf32>
    %c0_14 = arith.constant 0 : index
    %c0_15 = arith.constant 0 : index
    %19 = vector.load %arg6[%c0_14, %c0_15] : memref<64x128xf32, #tpu.memory_space<vmem>>, vector<64x128xf32>
    %20 = arith.addf %19, %18 : vector<64x128xf32>
    %c0_16 = arith.constant 0 : index
    %c0_17 = arith.constant 0 : index
    %21 = vector.load %arg6[%c0_16, %c0_17] : memref<64x128xf32, #tpu.memory_space<vmem>>, vector<64x128xf32>
    tpu.vector_store %arg6[%c0_16, %c0_17], %20 {strides = array<i32>} : memref<64x128xf32, #tpu.memory_space<vmem>>, vector<64x128xf32>,
    %c0_i32_18 = arith.constant 0 : i32
    %22 = arith.addi %1, %c0_i32_18 : i32
    %c0_19 = arith.constant 0 : index
    %23 = arith.index_cast %22 : i32 to index
    %c2 = arith.constant 2 : index
    %c0_20 = arith.constant 0 : index
    %24 = vector.load %arg2[%c0_19, %23, %c2, %c0_20] : memref<1x18x18x4xf32, #tpu.memory_space<vmem>>, vector<1x4x16x4xf32>
    %25 = vector.shape_cast %24 : vector<1x4x16x4xf32> to vector<4x16x4xf32>
    %26 = vector.shape_cast %25 : vector<4x16x4xf32> to vector<64x4xf32>
    %c2_21 = arith.constant 2 : index
    %c0_22 = arith.constant 0 : index
    %c0_23 = arith.constant 0 : index
    %27 = vector.load %arg3[%c2_21, %c0_22, %c0_23] : memref<9x4x128xf32, #tpu.memory_space<vmem>>, vector<1x4x128xf32>
    %28 = vector.shape_cast %27 : vector<1x4x128xf32> to vector<4x128xf32>
    %cst_24 = arith.constant dense<0.000000e+00> : vector<64x128xf32>
    %29 = tpu.matmul %26, %28, %cst_24 {dimension_numbers = #tpu.dot_dimension_numbers<[1], [0], [0], [1], [0, 0, 1, 1], [], []>} : vector<64x4xf32>, vector<4x128xf32>, vector<64x128xf32> -> vector<64x128xf32>
    %c0_25 = arith.constant 0 : index
    %c0_26 = arith.constant 0 : index
    %30 = vector.load %arg6[%c0_25, %c0_26] : memref<64x128xf32, #tpu.memory_space<vmem>>, vector<64x128xf32>
    %31 = arith.addf %30, %29 : vector<64x128xf32>
    %c0_27 = arith.constant 0 : index
    %c0_28 = arith.constant 0 : index
    %32 = vector.load %arg6[%c0_27, %c0_28] : memref<64x128xf32, #tpu.memory_space<vmem>>, vector<64x128xf32>
    tpu.vector_store %arg6[%c0_27, %c0_28], %31 {strides = array<i32>} : memref<64x128xf32, #tpu.memory_space<vmem>>, vector<64x128xf32>,
    %c1_i32 = arith.constant 1 : i32
    %33 = arith.addi %1, %c1_i32 : i32
    %c0_29 = arith.constant 0 : index
    %34 = arith.index_cast %33 : i32 to index
    %c0_30 = arith.constant 0 : index
    %c0_31 = arith.constant 0 : index
    %35 = vector.load %arg2[%c0_29, %34, %c0_30, %c0_31] : memref<1x18x18x4xf32, #tpu.memory_space<vmem>>, vector<1x4x16x4xf32>
    %36 = vector.shape_cast %35 : vector<1x4x16x4xf32> to vector<4x16x4xf32>
    %37 = vector.shape_cast %36 : vector<4x16x4xf32> to vector<64x4xf32>
    %c3 = arith.constant 3 : index
    %c0_32 = arith.constant 0 : index
    %c0_33 = arith.constant 0 : index
    %38 = vector.load %arg3[%c3, %c0_32, %c0_33] : memref<9x4x128xf32, #tpu.memory_space<vmem>>, vector<1x4x128xf32>
    %39 = vector.shape_cast %38 : vector<1x4x128xf32> to vector<4x128xf32>
    %cst_34 = arith.constant dense<0.000000e+00> : vector<64x128xf32>
    %40 = tpu.matmul %37, %39, %cst_34 {dimension_numbers = #tpu.dot_dimension_numbers<[1], [0], [0], [1], [0, 0, 1, 1], [], []>} : vector<64x4xf32>, vector<4x128xf32>, vector<64x128xf32> -> vector<64x128xf32>
    %c0_35 = arith.constant 0 : index
    %c0_36 = arith.constant 0 : index
    %41 = vector.load %arg6[%c0_35, %c0_36] : memref<64x128xf32, #tpu.memory_space<vmem>>, vector<64x128xf32>
    %42 = arith.addf %41, %40 : vector<64x128xf32>
    %c0_37 = arith.constant 0 : index
    %c0_38 = arith.constant 0 : index
    %43 = vector.load %arg6[%c0_37, %c0_38] : memref<64x128xf32, #tpu.memory_space<vmem>>, vector<64x128xf32>
    tpu.vector_store %arg6[%c0_37, %c0_38], %42 {strides = array<i32>} : memref<64x128xf32, #tpu.memory_space<vmem>>, vector<64x128xf32>,
    %c1_i32_39 = arith.constant 1 : i32
    %44 = arith.addi %1, %c1_i32_39 : i32
    %c0_40 = arith.constant 0 : index
    %45 = arith.index_cast %44 : i32 to index
    %c1_41 = arith.constant 1 : index
    %c0_42 = arith.constant 0 : index
    %46 = vector.load %arg2[%c0_40, %45, %c1_41, %c0_42] : memref<1x18x18x4xf32, #tpu.memory_space<vmem>>, vector<1x4x16x4xf32>
    %47 = vector.shape_cast %46 : vector<1x4x16x4xf32> to vector<4x16x4xf32>
    %48 = vector.shape_cast %47 : vector<4x16x4xf32> to vector<64x4xf32>
    %c4 = arith.constant 4 : index
    %c0_43 = arith.constant 0 : index
    %c0_44 = arith.constant 0 : index
    %49 = vector.load %arg3[%c4, %c0_43, %c0_44] : memref<9x4x128xf32, #tpu.memory_space<vmem>>, vector<1x4x128xf32>
    %50 = vector.shape_cast %49 : vector<1x4x128xf32> to vector<4x128xf32>
    %cst_45 = arith.constant dense<0.000000e+00> : vector<64x128xf32>
    %51 = tpu.matmul %48, %50, %cst_45 {dimension_numbers = #tpu.dot_dimension_numbers<[1], [0], [0], [1], [0, 0, 1, 1], [], []>} : vector<64x4xf32>, vector<4x128xf32>, vector<64x128xf32> -> vector<64x128xf32>
    %c0_46 = arith.constant 0 : index
    %c0_47 = arith.constant 0 : index
    %52 = vector.load %arg6[%c0_46, %c0_47] : memref<64x128xf32, #tpu.memory_space<vmem>>, vector<64x128xf32>
    %53 = arith.addf %52, %51 : vector<64x128xf32>
    %c0_48 = arith.constant 0 : index
    %c0_49 = arith.constant 0 : index
    %54 = vector.load %arg6[%c0_48, %c0_49] : memref<64x128xf32, #tpu.memory_space<vmem>>, vector<64x128xf32>
    tpu.vector_store %arg6[%c0_48, %c0_49], %53 {strides = array<i32>} : memref<64x128xf32, #tpu.memory_space<vmem>>, vector<64x128xf32>,
    %c1_i32_50 = arith.constant 1 : i32
    %55 = arith.addi %1, %c1_i32_50 : i32
    %c0_51 = arith.constant 0 : index
    %56 = arith.index_cast %55 : i32 to index
    %c2_52 = arith.constant 2 : index
    %c0_53 = arith.constant 0 : index
    %57 = vector.load %arg2[%c0_51, %56, %c2_52, %c0_53] : memref<1x18x18x4xf32, #tpu.memory_space<vmem>>, vector<1x4x16x4xf32>
    %58 = vector.shape_cast %57 : vector<1x4x16x4xf32> to vector<4x16x4xf32>
    %59 = vector.shape_cast %58 : vector<4x16x4xf32> to vector<64x4xf32>
    %c5 = arith.constant 5 : index
    %c0_54 = arith.constant 0 : index
    %c0_55 = arith.constant 0 : index
    %60 = vector.load %arg3[%c5, %c0_54, %c0_55] : memref<9x4x128xf32, #tpu.memory_space<vmem>>, vector<1x4x128xf32>
    %61 = vector.shape_cast %60 : vector<1x4x128xf32> to vector<4x128xf32>
    %cst_56 = arith.constant dense<0.000000e+00> : vector<64x128xf32>
    %62 = tpu.matmul %59, %61, %cst_56 {dimension_numbers = #tpu.dot_dimension_numbers<[1], [0], [0], [1], [0, 0, 1, 1], [], []>} : vector<64x4xf32>, vector<4x128xf32>, vector<64x128xf32> -> vector<64x128xf32>
    %c0_57 = arith.constant 0 : index
    %c0_58 = arith.constant 0 : index
    %63 = vector.load %arg6[%c0_57, %c0_58] : memref<64x128xf32, #tpu.memory_space<vmem>>, vector<64x128xf32>
    %64 = arith.addf %63, %62 : vector<64x128xf32>
    %c0_59 = arith.constant 0 : index
    %c0_60 = arith.constant 0 : index
    %65 = vector.load %arg6[%c0_59, %c0_60] : memref<64x128xf32, #tpu.memory_space<vmem>>, vector<64x128xf32>
    tpu.vector_store %arg6[%c0_59, %c0_60], %64 {strides = array<i32>} : memref<64x128xf32, #tpu.memory_space<vmem>>, vector<64x128xf32>,
    %c2_i32 = arith.constant 2 : i32
    %66 = arith.addi %1, %c2_i32 : i32
    %c0_61 = arith.constant 0 : index
    %67 = arith.index_cast %66 : i32 to index
    %c0_62 = arith.constant 0 : index
    %c0_63 = arith.constant 0 : index
    %68 = vector.load %arg2[%c0_61, %67, %c0_62, %c0_63] : memref<1x18x18x4xf32, #tpu.memory_space<vmem>>, vector<1x4x16x4xf32>
    %69 = vector.shape_cast %68 : vector<1x4x16x4xf32> to vector<4x16x4xf32>
    %70 = vector.shape_cast %69 : vector<4x16x4xf32> to vector<64x4xf32>
    %c6 = arith.constant 6 : index
    %c0_64 = arith.constant 0 : index
    %c0_65 = arith.constant 0 : index
    %71 = vector.load %arg3[%c6, %c0_64, %c0_65] : memref<9x4x128xf32, #tpu.memory_space<vmem>>, vector<1x4x128xf32>
    %72 = vector.shape_cast %71 : vector<1x4x128xf32> to vector<4x128xf32>
    %cst_66 = arith.constant dense<0.000000e+00> : vector<64x128xf32>
    %73 = tpu.matmul %70, %72, %cst_66 {dimension_numbers = #tpu.dot_dimension_numbers<[1], [0], [0], [1], [0, 0, 1, 1], [], []>} : vector<64x4xf32>, vector<4x128xf32>, vector<64x128xf32> -> vector<64x128xf32>
    %c0_67 = arith.constant 0 : index
    %c0_68 = arith.constant 0 : index
    %74 = vector.load %arg6[%c0_67, %c0_68] : memref<64x128xf32, #tpu.memory_space<vmem>>, vector<64x128xf32>
    %75 = arith.addf %74, %73 : vector<64x128xf32>
    %c0_69 = arith.constant 0 : index
    %c0_70 = arith.constant 0 : index
    %76 = vector.load %arg6[%c0_69, %c0_70] : memref<64x128xf32, #tpu.memory_space<vmem>>, vector<64x128xf32>
    tpu.vector_store %arg6[%c0_69, %c0_70], %75 {strides = array<i32>} : memref<64x128xf32, #tpu.memory_space<vmem>>, vector<64x128xf32>,
    %c2_i32_71 = arith.constant 2 : i32
    %77 = arith.addi %1, %c2_i32_71 : i32
    %c0_72 = arith.constant 0 : index
    %78 = arith.index_cast %77 : i32 to index
    %c1_73 = arith.constant 1 : index
    %c0_74 = arith.constant 0 : index
    %79 = vector.load %arg2[%c0_72, %78, %c1_73, %c0_74] : memref<1x18x18x4xf32, #tpu.memory_space<vmem>>, vector<1x4x16x4xf32>
    %80 = vector.shape_cast %79 : vector<1x4x16x4xf32> to vector<4x16x4xf32>
    %81 = vector.shape_cast %80 : vector<4x16x4xf32> to vector<64x4xf32>
    %c7 = arith.constant 7 : index
    %c0_75 = arith.constant 0 : index
    %c0_76 = arith.constant 0 : index
    %82 = vector.load %arg3[%c7, %c0_75, %c0_76] : memref<9x4x128xf32, #tpu.memory_space<vmem>>, vector<1x4x128xf32>
    %83 = vector.shape_cast %82 : vector<1x4x128xf32> to vector<4x128xf32>
    %cst_77 = arith.constant dense<0.000000e+00> : vector<64x128xf32>
    %84 = tpu.matmul %81, %83, %cst_77 {dimension_numbers = #tpu.dot_dimension_numbers<[1], [0], [0], [1], [0, 0, 1, 1], [], []>} : vector<64x4xf32>, vector<4x128xf32>, vector<64x128xf32> -> vector<64x128xf32>
    %c0_78 = arith.constant 0 : index
    %c0_79 = arith.constant 0 : index
    %85 = vector.load %arg6[%c0_78, %c0_79] : memref<64x128xf32, #tpu.memory_space<vmem>>, vector<64x128xf32>
    %86 = arith.addf %85, %84 : vector<64x128xf32>
    %c0_80 = arith.constant 0 : index
    %c0_81 = arith.constant 0 : index
    %87 = vector.load %arg6[%c0_80, %c0_81] : memref<64x128xf32, #tpu.memory_space<vmem>>, vector<64x128xf32>
    tpu.vector_store %arg6[%c0_80, %c0_81], %86 {strides = array<i32>} : memref<64x128xf32, #tpu.memory_space<vmem>>, vector<64x128xf32>,
    %c2_i32_82 = arith.constant 2 : i32
    %88 = arith.addi %1, %c2_i32_82 : i32
    %c0_83 = arith.constant 0 : index
    %89 = arith.index_cast %88 : i32 to index
    %c2_84 = arith.constant 2 : index
    %c0_85 = arith.constant 0 : index
    %90 = vector.load %arg2[%c0_83, %89, %c2_84, %c0_85] : memref<1x18x18x4xf32, #tpu.memory_space<vmem>>, vector<1x4x16x4xf32>
    %91 = vector.shape_cast %90 : vector<1x4x16x4xf32> to vector<4x16x4xf32>
    %92 = vector.shape_cast %91 : vector<4x16x4xf32> to vector<64x4xf32>
    %c8 = arith.constant 8 : index
    %c0_86 = arith.constant 0 : index
    %c0_87 = arith.constant 0 : index
    %93 = vector.load %arg3[%c8, %c0_86, %c0_87] : memref<9x4x128xf32, #tpu.memory_space<vmem>>, vector<1x4x128xf32>
    %94 = vector.shape_cast %93 : vector<1x4x128xf32> to vector<4x128xf32>
    %cst_88 = arith.constant dense<0.000000e+00> : vector<64x128xf32>
    %95 = tpu.matmul %92, %94, %cst_88 {dimension_numbers = #tpu.dot_dimension_numbers<[1], [0], [0], [1], [0, 0, 1, 1], [], []>} : vector<64x4xf32>, vector<4x128xf32>, vector<64x128xf32> -> vector<64x128xf32>
    %c0_89 = arith.constant 0 : index
    %c0_90 = arith.constant 0 : index
    %96 = vector.load %arg6[%c0_89, %c0_90] : memref<64x128xf32, #tpu.memory_space<vmem>>, vector<64x128xf32>
    %97 = arith.addf %96, %95 : vector<64x128xf32>
    %c0_91 = arith.constant 0 : index
    %c0_92 = arith.constant 0 : index
    %98 = vector.load %arg6[%c0_91, %c0_92] : memref<64x128xf32, #tpu.memory_space<vmem>>, vector<64x128xf32>
    tpu.vector_store %arg6[%c0_91, %c0_92], %97 {strides = array<i32>} : memref<64x128xf32, #tpu.memory_space<vmem>>, vector<64x128xf32>,
    %c0_93 = arith.constant 0 : index
    %c0_94 = arith.constant 0 : index
    %99 = vector.load %arg6[%c0_93, %c0_94] : memref<64x128xf32, #tpu.memory_space<vmem>>, vector<64x128xf32>
    %c0_95 = arith.constant 0 : index
    %c0_96 = arith.constant 0 : index
    %100 = vector.load %arg4[%c0_95, %c0_96] : memref<1x128xf32, #tpu.memory_space<vmem>>, vector<1x128xf32>
    %101 = vector.broadcast %100 : vector<1x128xf32> to vector<64x128xf32>
    %102 = arith.addf %99, %101 : vector<64x128xf32>
    %cst_97 = arith.constant 0.000000e+00 : f32
    %103 = vector.broadcast %cst_97 : f32 to vector<64x128xf32>
    %104 = arith.maximumf %102, %103 : vector<64x128xf32>
    %c0_98 = arith.constant 0 : index
    %c0_99 = arith.constant 0 : index
    %c0_100 = arith.constant 0 : index
    %105 = vector.load %arg5[%c0_98, %c0_99, %c0_100] : memref<1x64x128xf32, #tpu.memory_space<vmem>>, vector<1x64x128xf32>
    %106 = vector.shape_cast %105 : vector<1x64x128xf32> to vector<64x128xf32>
    %107 = vector.shape_cast %104 : vector<64x128xf32> to vector<1x64x128xf32>
    tpu.vector_store %arg5[%c0_98, %c0_99, %c0_100], %107 {strides = array<i32>} : memref<1x64x128xf32, #tpu.memory_space<vmem>>, vector<1x64x128xf32>,
    return
  }
  func.func @transform_0(%arg0: i32, %arg1: i32) -> (i32, i32, i32, i32) {
    %c0_i32 = arith.constant 0 : i32
    %c0_i32_0 = arith.constant 0 : i32
    %c0_i32_1 = arith.constant 0 : i32
    %c0_i32_2 = arith.constant 0 : i32
    return %arg0, %c0_i32, %c0_i32_0, %c0_i32_1 : i32, i32, i32, i32
  }
  func.func @transform_1(%arg0: i32, %arg1: i32) -> (i32, i32, i32) {
    %c0_i32 = arith.constant 0 : i32
    %c0_i32_0 = arith.constant 0 : i32
    %c0_i32_1 = arith.constant 0 : i32
    %c0_i32_2 = arith.constant 0 : i32
    return %c0_i32, %c0_i32_0, %c0_i32_1 : i32, i32, i32
  }
  func.func @transform_2(%arg0: i32, %arg1: i32) -> (i32, i32) {
    %c0_i32 = arith.constant 0 : i32
    %c0_i32_0 = arith.constant 0 : i32
    %c0_i32_1 = arith.constant 0 : i32
    return %c0_i32, %c0_i32_0 : i32, i32
  }
  func.func @transform_3(%arg0: i32, %arg1: i32) -> (i32, i32, i32) {
    %c0_i32 = arith.constant 0 : i32
    %c0_i32_0 = arith.constant 0 : i32
    return %arg0, %arg1, %c0_i32 : i32, i32, i32
  }
}

</mosaic_0001>

<llo_original>
// kernel: tpu_custom_call.1
$region0: #{tpu_custom_call.1}
  #allocation0 [shape = 'u32[]', space=smem, size = 0x4, offset = 0x4, fixed_abs, tag = 'smem constant byte address 0x4 - core index']
  #allocation1 [shape = 'u32[144,128]{1,0:T(1,128)}', space=vmem, size = 0x12000, scoped, tag = 'internal scratch']
  #allocation2 [shape = 'f32[64,128]{1,0:T(8,128)}', space=vmem, size = 0x8000, scoped, tag = 'scratch operand']
  %s0 = inlined_call_operand.vmem [shape: f32[2,18,18,4], index: 0, kind: input, shape index: {}]
  %s1 = inlined_call_operand.vmem [shape: f32[9,4,128], index: 1, kind: input, shape index: {}]
  %s2 = inlined_call_operand.vmem [shape: f32[1,128], index: 2, kind: input, shape index: {}]
  %s3 = inlined_call_operand.hbm [shape: f32[2,256,128], index: 3, kind: output, shape index: {}]
  %s4 = sld [smem:[#allocation0]]
  $region45: #{tpu_custom_call.1} parent=0
    _
  %s6 = ssub.s32 1, %s4
  %s7 = scalar_select 0, %s6, %s4
  $region1: #{tpu_custom_call.1} parent=0
    #allocation3 [shape = 'u8[65536]{0}', space=vmem, size = 0x10000, scoped, tag = 'output window, operand 0']
    #allocation4 [shape = 's32[2]{0}', space=sflag, size = 0x8, scoped, tag = 'scoped memory for tpu_custom_call.1']
    %8 = vsyncpa [#allocation4], 0
    %s9 = scalar_lea.sflag [#allocation4], 1
    %10 = vsyncpa %s9, 0
    loop: start=0, step=1, limit=10
    $region2: #{tpu_custom_call.1} parent=1 // loop_pre_header
      _
    $region3: #{tpu_custom_call.1} parent=1 // loop_header
      %s12 = sphi 0, %s16
      %p13 = scmp.ge.s32.totalorder %s12, 10
      %s19 = sphi 0, %s31
      %s20 = sphi 0, %s27
      %s21 = sphi 0, %s19
      %s22 = sphi 0, %s20
      %s23 = sphi 0, %s21
      %s24 = sphi 0, %s22
      %s34 = sphi 0, %s36
      %s37 = sphi 0, %s34
      %s38 = sphi 0, %s37
      %s54 = sphi 0, %s38
      %s58 = sphi 0, %s58
      %s60 = sphi 0, %s58
      %s61 = sphi 0, %s60
      %s75 = sphi 0, %s61
      %s79 = sphi 0, %s79
      %s81 = sphi 0, %s79
      %s82 = sphi 0, %s81
      %s96 = sphi 0, %s82
      %s104 = sphi 0, %s106
      %s107 = sphi 0, %s104
      %s108 = sphi 0, %s107
      %s124 = sphi 0, %s108
    $region4: #{tpu_custom_call.1} parent=1 // loop_header_branch
      %15 = sbr.rel (%p13) target = $region8
    $region5: #{tpu_custom_call.1} parent=1 // loop_body
      %s17 = ssub.s32 %s12, 1
      %s18 = ssub.s32 %s12, 2
      %s25 = sadd.s32 1, %s20
      %p26 = scmp.ge.s32.totalorder %s25, 4
      %s27 = scalar_select %p26, 0, %s25
      %s28 = sadd.s32 1, %s19
      %s29 = scalar_select %p26, %s28, %s19
      %p30 = scmp.ge.s32.totalorder %s29, 2
      %s31 = scalar_select %p30, 0, %s29
      %s32 = ssub.s32 %s19, %s31
      %p33 = scmp.eq.s32.totalorder %s32, 0
      %s35 = sadd.s32 %s34, 1
      %s36 = scalar_select %p33, %s34, %s35
      %p39 = pneg %p33
      %p40 = scmp.eq.s32.totalorder %s12, 7
      %p41 = por %p39, %p40
      %p42 = scmp.ne.s32.totalorder %s34, %s37
      %p43 = scmp.eq.s32.totalorder %s12, 0
      %p44 = por %p42, %p43
      %p45 = scmp.ne.s32.totalorder %s34, %s37
      %p46 = scmp.eq.s32.totalorder %s17, 7
      %p47 = por %p45, %p46
      %p48 = scmp.ne.s32.totalorder %s37, %s38
      %p49 = scmp.eq.s32.totalorder %s17, 0
      %p50 = por %p48, %p49
      %p51 = scmp.ne.s32.totalorder %s37, %s38
      %p52 = scmp.eq.s32.totalorder %s18, 7
      %p53 = por %p51, %p52
      %p55 = scmp.ne.s32.totalorder %s38, %s54
      %p56 = scmp.eq.s32.totalorder %s18, 0
      %p57 = por %p55, %p56
      %s59 = sadd.s32 %s58, 1
      %p62 = scmp.eq.s32.totalorder %s12, 7
      %p63 = scmp.ne.s32.totalorder %s58, %s60
      %p64 = scmp.eq.s32.totalorder %s12, 0
      %p65 = por %p63, %p64
      %p66 = scmp.ne.s32.totalorder %s58, %s60
      %p67 = scmp.eq.s32.totalorder %s17, 7
      %p68 = por %p66, %p67
      %p69 = scmp.ne.s32.totalorder %s60, %s61
      %p70 = scmp.eq.s32.totalorder %s17, 0
      %p71 = por %p69, %p70
      %p72 = scmp.ne.s32.totalorder %s60, %s61
      %p73 = scmp.eq.s32.totalorder %s18, 7
      %p74 = por %p72, %p73
      %p76 = scmp.ne.s32.totalorder %s61, %s75
      %p77 = scmp.eq.s32.totalorder %s18, 0
      %p78 = por %p76, %p77
      %s80 = sadd.s32 %s79, 1
      %p83 = scmp.eq.s32.totalorder %s12, 7
      %p84 = scmp.ne.s32.totalorder %s79, %s81
      %p85 = scmp.eq.s32.totalorder %s12, 0
      %p86 = por %p84, %p85
      %p87 = scmp.ne.s32.totalorder %s79, %s81
      %p88 = scmp.eq.s32.totalorder %s17, 7
      %p89 = por %p87, %p88
      %p90 = scmp.ne.s32.totalorder %s81, %s82
      %p91 = scmp.eq.s32.totalorder %s17, 0
      %p92 = por %p90, %p91
      %p93 = scmp.ne.s32.totalorder %s81, %s82
      %p94 = scmp.eq.s32.totalorder %s18, 7
      %p95 = por %p93, %p94
      %p97 = scmp.ne.s32.totalorder %s82, %s96
      %p98 = scmp.eq.s32.totalorder %s18, 0
      %p99 = por %p97, %p98
      %s100 = ssub.s32 %s19, %s31
      %s101 = ssub.s32 %s20, %s27
      %s102 = sor.u32 %s100, %s101
      %p103 = scmp.eq.s32.totalorder %s102, 0
      %s105 = sadd.s32 %s104, 1
      %s106 = scalar_select %p103, %s104, %s105
      %p109 = pneg %p103
      %p110 = scmp.eq.s32.totalorder %s12, 7
      %p111 = por %p109, %p110
      %p112 = scmp.ne.s32.totalorder %s104, %s107
      %p113 = scmp.eq.s32.totalorder %s12, 0
      %p114 = por %p112, %p113
      %p115 = scmp.ne.s32.totalorder %s104, %s107
      %p116 = scmp.eq.s32.totalorder %s17, 7
      %p117 = por %p115, %p116
      %p118 = scmp.ne.s32.totalorder %s107, %s108
      %p119 = scmp.eq.s32.totalorder %s17, 0
      %p120 = por %p118, %p119
      %p121 = scmp.ne.s32.totalorder %s107, %s108
      %p122 = scmp.eq.s32.totalorder %s18, 7
      %p123 = por %p121, %p122
      %p125 = scmp.ne.s32.totalorder %s108, %s124
      %p126 = scmp.eq.s32.totalorder %s18, 0
      %p127 = por %p125, %p126
      %p128 = scmp.le.s32.totalorder 1, %s12
      %p129 = scmp.lt.s32.totalorder %s12, 9
      %p130 = pnand %p128, %p129
      %p131 = pneg %p130
      // Predicated region
      $region9: #{tpu_custom_call.1} parent=5 // pred_check
        _
      $region10: #{tpu_custom_call.1} parent=5 // pred_check_branch
        %133 = sbr.rel (%p130) target = $region12
      $region11: #{tpu_custom_call.1} parent=5 // pred_region
        %s134 = ssub.s32 %s12, 1
        // Predicated region
        $region13: #{tpu_custom_call.1} parent=11 // pred_check
          %p135 = pneg %p71
        $region14: #{tpu_custom_call.1} parent=11 // pred_check_branch
          %137 = sbr.rel (%p135) target = $region16
        $region15: #{tpu_custom_call.1} parent=11 // pred_region
          _
        $region16: #{tpu_custom_call.1} parent=11 // pred_fallthru
          _
        // Predicated region
        $region17: #{tpu_custom_call.1} parent=11 // pred_check
          %p138 = pneg %p92
        $region18: #{tpu_custom_call.1} parent=11 // pred_check_branch
          %140 = sbr.rel (%p138) target = $region20
        $region19: #{tpu_custom_call.1} parent=11 // pred_region
          _
        $region20: #{tpu_custom_call.1} parent=11 // pred_fallthru
          _
      $region12: #{tpu_custom_call.1} parent=5 // pred_fallthru
        _
      %p141 = scmp.lt.s32.totalorder %s12, 8
      // Predicated region
      $region21: #{tpu_custom_call.1} parent=5 // pred_check
        %p142 = pneg %p141
      $region22: #{tpu_custom_call.1} parent=5 // pred_check_branch
        %144 = sbr.rel (%p142) target = $region24
      $region23: #{tpu_custom_call.1} parent=5 // pred_region
        // Predicated region
        $region25: #{tpu_custom_call.1} parent=23 // pred_check
          %p145 = pneg %p44
        $region26: #{tpu_custom_call.1} parent=23 // pred_check_branch
          %147 = sbr.rel (%p145) target = $region28
        $region27: #{tpu_custom_call.1} parent=23 // pred_region
          %p148 = scmp.lt.s32.totalorder %s19, 1
          %s149 = scalar_select %p148, %s19, 1
          %s150 = smul.addr %s149, 54
          %s151 = smul.addr %s150, 8
          %s152 = scalar_lea.vmem %s0, %s151
        $region28: #{tpu_custom_call.1} parent=23 // pred_fallthru
          _
      $region24: #{tpu_custom_call.1} parent=5 // pred_fallthru
        _
      %p153 = scmp.le.s32.totalorder 1, %s12
      %p154 = scmp.lt.s32.totalorder %s12, 9
      %p155 = pnand %p153, %p154
      %p156 = pneg %p155
      // Predicated region
      $region29: #{tpu_custom_call.1} parent=5 // pred_check
        _
      $region30: #{tpu_custom_call.1} parent=5 // pred_check_branch
        %158 = sbr.rel (%p155) target = $region32
      $region31: #{tpu_custom_call.1} parent=5 // pred_region
        %s159 = ssub.s32 %s12, 1
        %p160 = scmp.lt.s32.totalorder %s21, 1
        %s161 = scalar_select %p160, %s21, 1
        %s162 = smul.addr %s161, 54
        %s163 = smul.addr %s162, 8
        %s164 = scalar_lea.vmem %s0, %s163
        %p165 = pneg %p50
        %p166 = pneg %p47
        %p167 = pneg %p71
        %p168 = pneg %p68
        %p169 = pneg %p92
        %p170 = pneg %p89
        %p171 = pneg %p120
        %p172 = pneg %p117
        %s173 = sand.u32 %s107, 1
        %s174 = scalar_lea.sflag [#allocation4], %s173
        %s175 = sand.u32 %s107, 1
        %s176 = smul.addr %s175, 64
        %s177 = scalar_lea.vmem [#allocation3], %s176
        %p178 = scmp.lt.s32.totalorder %s21, 1
        %s179 = scalar_select %p178, %s21, 1
        %s180 = smul.addr %s179, 54
        %s181 = smul.addr %s180, 8
        %s182 = scalar_lea.vmem %s0, %s181
        %s183 = smul.u32 8, %s22
        %s184 = smul.u32 %s22, 4
        %s185 = smul.u32 %s184, 24
        %s186 = scalar_lea.vmem %s182, %s185
        %v187 = vld [vmem:[%s186] sm:$0xff]
        %v188 = vld [vmem:[%s186 + $0x8] sm:$0xff]
        %v189 = vld [vmem:[%s186 + $0x18] sm:$0xff]
        %v190 = vld [vmem:[%s186 + $0x20] sm:$0xff]
        %v191 = vld [vmem:[%s186 + $0x30] sm:$0xff]
        %v192 = vld [vmem:[%s186 + $0x38] sm:$0xff]
        %v193 = vld [vmem:[%s186 + $0x48] sm:$0xff]
        %v194 = vld [vmem:[%s186 + $0x50] sm:$0xff]
        %v195 = vld [vmem:[%s1] sm:$0xf]
        %vm196 = vcmask 31744
        %v198 = vsel %vm196, %v187, 0
        %v201 = vsel %vm196, %v188, 0
        %v204 = vsel %vm196, %v189, 0
        %v207 = vsel %vm196, %v190, 0
        %v210 = vsel %vm196, %v191, 0
        %v213 = vsel %vm196, %v192, 0
        %v216 = vsel %vm196, %v193, 0
        %v219 = vsel %vm196, %v194, 0
        %vm221 = vcmask 1043456
        %v223 = vsel %vm221, %v195, 0
        %225 = vmatprep.subr.mxu0 0.0
        %226 = vmatpush1.msra.mxu0 %v223
        %227 = vmatprep.subr.mxu0 0.0
        %228 = vmatpush1.msra.mxu0 0.0
        %229 = vmatprep.subr.mxu0 0.0
        %230 = vmatpush1.msra.mxu0 0.0
        %231 = vmatprep.subr.mxu0 0.0
        %232 = vmatpush1.msra.mxu0 0.0
        %233 = vmatprep.subr.mxu0 0.0
        %234 = vmatpush1.msra.mxu0 0.0
        %235 = vmatprep.subr.mxu0 0.0
        %236 = vmatpush1.msra.mxu0 0.0
        %237 = vmatprep.subr.mxu0 0.0
        %238 = vmatpush1.msra.mxu0 0.0
        %239 = vmatprep.subr.mxu0 0.0
        %240 = vmatpush1.msra.mxu0 0.0
        %241 = vmatprep.subr.mxu0 0.0
        %242 = vmatpush1.msra.mxu0 0.0
        %243 = vmatprep.subr.mxu0 0.0
        %244 = vmatpush1.msra.mxu0 0.0
        %245 = vmatprep.subr.mxu0 0.0
        %246 = vmatpush1.msra.mxu0 0.0
        %247 = vmatprep.subr.mxu0 0.0
        %248 = vmatpush1.msra.mxu0 0.0
        %249 = vmatprep.subr.mxu0 0.0
        %250 = vmatpush1.msra.mxu0 0.0
        %251 = vmatprep.subr.mxu0 0.0
        %252 = vmatpush1.msra.mxu0 0.0
        %253 = vmatprep.subr.mxu0 0.0
        %254 = vmatpush1.msra.mxu0 0.0
        %255 = vmatprep.subr.mxu0 0.0
        %256 = vmatpush1.msra.mxu0 0.0
        %257 = vmatprep.subr.mxu0 0.0
        %258 = vmatpush1.msra.mxu0 0.0
        %259 = vmatprep.subr.mxu0 0.0
        %260 = vmatpush1.msra.mxu0 0.0
        %261 = vmatprep.subr.mxu0 0.0
        %262 = vmatpush1.msra.mxu0 0.0
        %263 = vmatprep.subr.mxu0 0.0
        %264 = vmatpush1.msra.mxu0 0.0
        %265 = vmatprep.subr.mxu0 0.0
        %266 = vmatpush1.msra.mxu0 0.0
        %267 = vmatprep.subr.mxu0 0.0
        %268 = vmatpush1.msra.mxu0 0.0
        %269 = vmatprep.subr.mxu0 0.0
        %270 = vmatpush1.msra.mxu0 0.0
        %271 = vmatprep.subr.mxu0 0.0
        %272 = vmatpush1.msra.mxu0 0.0
        %273 = vmatprep.subr.mxu0 0.0
        %274 = vmatpush1.msra.mxu0 0.0
        %275 = vmatprep.subr.mxu0 0.0
        %276 = vmatpush1.msra.mxu0 0.0
        %277 = vmatprep.subr.mxu0 0.0
        %278 = vmatpush1.msra.mxu0 0.0
        %279 = vmatprep.subr.mxu0 0.0
        %280 = vmatpush1.msra.mxu0 0.0
        %281 = vmatprep.subr.mxu0 0.0
        %282 = vmatpush1.msra.mxu0 0.0
        %283 = vmatprep.subr.mxu0 0.0
        %284 = vmatpush1.msra.mxu0 0.0
        %285 = vmatprep.subr.mxu0 0.0
        %286 = vmatpush1.msra.mxu0 0.0
        %287 = vmatprep.subr.mxu0 0.0
        %288 = vmatpush1.msra.mxu0 0.0
        %289 = vmatprep.mubr.f32.mxu0 0.0
        %290 = vmatmul.mubr.f32.gmra.mrb[0].mxu0 %v198
        %v291 = vpop.f32.mrb[0].mxu0
        %v292 = vadd.f32 0.0, %v291
        %v293 = vpop.f32.mrb[0].mxu0
        %294 = vmatprep.mubr.f32.mxu0 0.0
        %295 = vmatmul.mubr.f32.gmra.mrb[0].mxu0 %v201
        %v296 = vpop.f32.mrb[0].mxu0
        %v297 = vadd.f32 0.0, %v296
        %v298 = vpop.f32.mrb[0].mxu0
        %299 = vmatprep.mubr.f32.mxu0 0.0
        %300 = vmatmul.mubr.f32.gmra.mrb[0].mxu0 %v204
        %v301 = vpop.f32.mrb[0].mxu0
        %v302 = vadd.f32 0.0, %v301
        %v303 = vpop.f32.mrb[0].mxu0
        %304 = vmatprep.mubr.f32.mxu0 0.0
        %305 = vmatmul.mubr.f32.gmra.mrb[0].mxu0 %v207
        %v306 = vpop.f32.mrb[0].mxu0
        %v307 = vadd.f32 0.0, %v306
        %v308 = vpop.f32.mrb[0].mxu0
        %309 = vmatprep.mubr.f32.mxu0 0.0
        %310 = vmatmul.mubr.f32.gmra.mrb[0].mxu0 %v210
        %v311 = vpop.f32.mrb[0].mxu0
        %v312 = vadd.f32 0.0, %v311
        %v313 = vpop.f32.mrb[0].mxu0
        %314 = vmatprep.mubr.f32.mxu0 0.0
        %315 = vmatmul.mubr.f32.gmra.mrb[0].mxu0 %v213
        %v316 = vpop.f32.mrb[0].mxu0
        %v317 = vadd.f32 0.0, %v316
        %v318 = vpop.f32.mrb[0].mxu0
        %319 = vmatprep.mubr.f32.mxu0 0.0
        %320 = vmatmul.mubr.f32.gmra.mrb[0].mxu0 %v216
        %v321 = vpop.f32.mrb[0].mxu0
        %v322 = vadd.f32 0.0, %v321
        %v323 = vpop.f32.mrb[0].mxu0
        %324 = vmatprep.mubr.f32.mxu0 0.0
        %325 = vmatmul.mubr.f32.gmra.mrb[0].mxu0 %v219
        %v326 = vpop.f32.mrb[0].mxu0
        %v327 = vadd.f32 0.0, %v326
        %v328 = vpop.f32.mrb[0].mxu0
        %329 = vdwg.mxu0
        %330 = vst [vmem:[#allocation2] sm:$0xff] %v292
        %331 = vst [vmem:[#allocation2 + $0x8] sm:$0xff] %v297
        %332 = vst [vmem:[#allocation2 + $0x10] sm:$0xff] %v302
        %333 = vst [vmem:[#allocation2 + $0x18] sm:$0xff] %v307
        %334 = vst [vmem:[#allocation2 + $0x20] sm:$0xff] %v312
        %335 = vst [vmem:[#allocation2 + $0x28] sm:$0xff] %v317
        %336 = vst [vmem:[#allocation2 + $0x30] sm:$0xff] %v322
        %337 = vst [vmem:[#allocation2 + $0x38] sm:$0xff] %v327
        %v338 = vld [vmem:[%s186 + $0x1] sm:$0xff]
        %v339 = vld [vmem:[%s186 + $0x9] sm:$0xff]
        %v340 = vld [vmem:[%s186 + $0x19] sm:$0xff]
        %v341 = vld [vmem:[%s186 + $0x21] sm:$0xff]
        %v342 = vld [vmem:[%s186 + $0x31] sm:$0xff]
        %v343 = vld [vmem:[%s186 + $0x39] sm:$0xff]
        %v344 = vld [vmem:[%s186 + $0x49] sm:$0xff]
        %v345 = vld [vmem:[%s186 + $0x51] sm:$0xff]
        %s346 = scalar_lea.vmem %s1, 4
        %v347 = vld [vmem:[%s346] sm:$0xf]
        %v349 = vsel %vm196, %v338, 0
        %v352 = vsel %vm196, %v339, 0
        %v355 = vsel %vm196, %v340, 0
        %v358 = vsel %vm196, %v341, 0
        %v361 = vsel %vm196, %v342, 0
        %v364 = vsel %vm196, %v343, 0
        %v367 = vsel %vm196, %v344, 0
        %v370 = vsel %vm196, %v345, 0
        %v373 = vsel %vm221, %v347, 0
        %375 = vmatprep.subr.mxu0 0.0
        %376 = vmatpush1.msra.mxu0 %v373
        %377 = vmatprep.subr.mxu0 0.0
        %378 = vmatpush1.msra.mxu0 0.0
        %379 = vmatprep.subr.mxu0 0.0
        %380 = vmatpush1.msra.mxu0 0.0
        %381 = vmatprep.subr.mxu0 0.0
        %382 = vmatpush1.msra.mxu0 0.0
        %383 = vmatprep.subr.mxu0 0.0
        %384 = vmatpush1.msra.mxu0 0.0
        %385 = vmatprep.subr.mxu0 0.0
        %386 = vmatpush1.msra.mxu0 0.0
        %387 = vmatprep.subr.mxu0 0.0
        %388 = vmatpush1.msra.mxu0 0.0
        %389 = vmatprep.subr.mxu0 0.0
        %390 = vmatpush1.msra.mxu0 0.0
        %391 = vmatprep.subr.mxu0 0.0
        %392 = vmatpush1.msra.mxu0 0.0
        %393 = vmatprep.subr.mxu0 0.0
        %394 = vmatpush1.msra.mxu0 0.0
        %395 = vmatprep.subr.mxu0 0.0
        %396 = vmatpush1.msra.mxu0 0.0
        %397 = vmatprep.subr.mxu0 0.0
        %398 = vmatpush1.msra.mxu0 0.0
        %399 = vmatprep.subr.mxu0 0.0
        %400 = vmatpush1.msra.mxu0 0.0
        %401 = vmatprep.subr.mxu0 0.0
        %402 = vmatpush1.msra.mxu0 0.0
        %403 = vmatprep.subr.mxu0 0.0
        %404 = vmatpush1.msra.mxu0 0.0
        %405 = vmatprep.subr.mxu0 0.0
        %406 = vmatpush1.msra.mxu0 0.0
        %407 = vmatprep.subr.mxu0 0.0
        %408 = vmatpush1.msra.mxu0 0.0
        %409 = vmatprep.subr.mxu0 0.0
        %410 = vmatpush1.msra.mxu0 0.0
        %411 = vmatprep.subr.mxu0 0.0
        %412 = vmatpush1.msra.mxu0 0.0
        %413 = vmatprep.subr.mxu0 0.0
        %414 = vmatpush1.msra.mxu0 0.0
        %415 = vmatprep.subr.mxu0 0.0
        %416 = vmatpush1.msra.mxu0 0.0
        %417 = vmatprep.subr.mxu0 0.0
        %418 = vmatpush1.msra.mxu0 0.0
        %419 = vmatprep.subr.mxu0 0.0
        %420 = vmatpush1.msra.mxu0 0.0
        %421 = vmatprep.subr.mxu0 0.0
        %422 = vmatpush1.msra.mxu0 0.0
        %423 = vmatprep.subr.mxu0 0.0
        %424 = vmatpush1.msra.mxu0 0.0
        %425 = vmatprep.subr.mxu0 0.0
        %426 = vmatpush1.msra.mxu0 0.0
        %427 = vmatprep.subr.mxu0 0.0
        %428 = vmatpush1.msra.mxu0 0.0
        %429 = vmatprep.subr.mxu0 0.0
        %430 = vmatpush1.msra.mxu0 0.0
        %431 = vmatprep.subr.mxu0 0.0
        %432 = vmatpush1.msra.mxu0 0.0
        %433 = vmatprep.subr.mxu0 0.0
        %434 = vmatpush1.msra.mxu0 0.0
        %435 = vmatprep.subr.mxu0 0.0
        %436 = vmatpush1.msra.mxu0 0.0
        %437 = vmatprep.subr.mxu0 0.0
        %438 = vmatpush1.msra.mxu0 0.0
        %439 = vmatprep.mubr.f32.mxu0 0.0
        %440 = vmatmul.mubr.f32.gmra.mrb[0].mxu0 %v349
        %v441 = vpop.f32.mrb[0].mxu0
        %v442 = vadd.f32 0.0, %v441
        %v443 = vpop.f32.mrb[0].mxu0
        %444 = vmatprep.mubr.f32.mxu0 0.0
        %445 = vmatmul.mubr.f32.gmra.mrb[0].mxu0 %v352
        %v446 = vpop.f32.mrb[0].mxu0
        %v447 = vadd.f32 0.0, %v446
        %v448 = vpop.f32.mrb[0].mxu0
        %449 = vmatprep.mubr.f32.mxu0 0.0
        %450 = vmatmul.mubr.f32.gmra.mrb[0].mxu0 %v355
        %v451 = vpop.f32.mrb[0].mxu0
        %v452 = vadd.f32 0.0, %v451
        %v453 = vpop.f32.mrb[0].mxu0
        %454 = vmatprep.mubr.f32.mxu0 0.0
        %455 = vmatmul.mubr.f32.gmra.mrb[0].mxu0 %v358
        %v456 = vpop.f32.mrb[0].mxu0
        %v457 = vadd.f32 0.0, %v456
        %v458 = vpop.f32.mrb[0].mxu0
        %459 = vmatprep.mubr.f32.mxu0 0.0
        %460 = vmatmul.mubr.f32.gmra.mrb[0].mxu0 %v361
        %v461 = vpop.f32.mrb[0].mxu0
        %v462 = vadd.f32 0.0, %v461
        %v463 = vpop.f32.mrb[0].mxu0
        %464 = vmatprep.mubr.f32.mxu0 0.0
        %465 = vmatmul.mubr.f32.gmra.mrb[0].mxu0 %v364
        %v466 = vpop.f32.mrb[0].mxu0
        %v467 = vadd.f32 0.0, %v466
        %v468 = vpop.f32.mrb[0].mxu0
        %469 = vmatprep.mubr.f32.mxu0 0.0
        %470 = vmatmul.mubr.f32.gmra.mrb[0].mxu0 %v367
        %v471 = vpop.f32.mrb[0].mxu0
        %v472 = vadd.f32 0.0, %v471
        %v473 = vpop.f32.mrb[0].mxu0
        %474 = vmatprep.mubr.f32.mxu0 0.0
        %475 = vmatmul.mubr.f32.gmra.mrb[0].mxu0 %v370
        %v476 = vpop.f32.mrb[0].mxu0
        %v477 = vadd.f32 0.0, %v476
        %v478 = vpop.f32.mrb[0].mxu0
        %479 = vdwg.mxu0
        %v480 = vld [vmem:[#allocation2] sm:$0xff]
        %v481 = vld [vmem:[#allocation2 + $0x8] sm:$0xff]
        %v482 = vld [vmem:[#allocation2 + $0x10] sm:$0xff]
        %v483 = vld [vmem:[#allocation2 + $0x18] sm:$0xff]
        %v484 = vld [vmem:[#allocation2 + $0x20] sm:$0xff]
        %v485 = vld [vmem:[#allocation2 + $0x28] sm:$0xff]
        %v486 = vld [vmem:[#allocation2 + $0x30] sm:$0xff]
        %v487 = vld [vmem:[#allocation2 + $0x38] sm:$0xff]
        %v488 = vadd.f32 %v480, %v442
        %v489 = vadd.f32 %v481, %v447
        %v490 = vadd.f32 %v482, %v452
        %v491 = vadd.f32 %v483, %v457
        %v492 = vadd.f32 %v484, %v462
        %v493 = vadd.f32 %v485, %v467
        %v494 = vadd.f32 %v486, %v472
        %v495 = vadd.f32 %v487, %v477
        %496 = vst [vmem:[#allocation2] sm:$0xff] %v488
        %497 = vst [vmem:[#allocation2 + $0x8] sm:$0xff] %v489
        %498 = vst [vmem:[#allocation2 + $0x10] sm:$0xff] %v490
        %499 = vst [vmem:[#allocation2 + $0x18] sm:$0xff] %v491
        %500 = vst [vmem:[#allocation2 + $0x20] sm:$0xff] %v492
        %501 = vst [vmem:[#allocation2 + $0x28] sm:$0xff] %v493
        %502 = vst [vmem:[#allocation2 + $0x30] sm:$0xff] %v494
        %503 = vst [vmem:[#allocation2 + $0x38] sm:$0xff] %v495
        %v504 = vld [vmem:[%s186 + $0x2] sm:$0xff]
        %v505 = vld [vmem:[%s186 + $0xa] sm:$0xff]
        %v506 = vld [vmem:[%s186 + $0x1a] sm:$0xff]
        %v507 = vld [vmem:[%s186 + $0x22] sm:$0xff]
        %v508 = vld [vmem:[%s186 + $0x32] sm:$0xff]
        %v509 = vld [vmem:[%s186 + $0x3a] sm:$0xff]
        %v510 = vld [vmem:[%s186 + $0x4a] sm:$0xff]
        %v511 = vld [vmem:[%s186 + $0x52] sm:$0xff]
        %s512 = scalar_lea.vmem %s1, 8
        %v513 = vld [vmem:[%s512] sm:$0xf]
        %v515 = vsel %vm196, %v504, 0
        %v518 = vsel %vm196, %v505, 0
        %v521 = vsel %vm196, %v506, 0
        %v524 = vsel %vm196, %v507, 0
        %v527 = vsel %vm196, %v508, 0
        %v530 = vsel %vm196, %v509, 0
        %v533 = vsel %vm196, %v510, 0
        %v536 = vsel %vm196, %v511, 0
        %v539 = vsel %vm221, %v513, 0
        %541 = vmatprep.subr.mxu0 0.0
        %542 = vmatpush1.msra.mxu0 %v539
        %543 = vmatprep.subr.mxu0 0.0
        %544 = vmatpush1.msra.mxu0 0.0
        %545 = vmatprep.subr.mxu0 0.0
        %546 = vmatpush1.msra.mxu0 0.0
        %547 = vmatprep.subr.mxu0 0.0
        %548 = vmatpush1.msra.mxu0 0.0
        %549 = vmatprep.subr.mxu0 0.0
        %550 = vmatpush1.msra.mxu0 0.0
        %551 = vmatprep.subr.mxu0 0.0
        %552 = vmatpush1.msra.mxu0 0.0
        %553 = vmatprep.subr.mxu0 0.0
        %554 = vmatpush1.msra.mxu0 0.0
        %555 = vmatprep.subr.mxu0 0.0
        %556 = vmatpush1.msra.mxu0 0.0
        %557 = vmatprep.subr.mxu0 0.0
        %558 = vmatpush1.msra.mxu0 0.0
        %559 = vmatprep.subr.mxu0 0.0
        %560 = vmatpush1.msra.mxu0 0.0
        %561 = vmatprep.subr.mxu0 0.0
        %562 = vmatpush1.msra.mxu0 0.0
        %563 = vmatprep.subr.mxu0 0.0
        %564 = vmatpush1.msra.mxu0 0.0
        %565 = vmatprep.subr.mxu0 0.0
        %566 = vmatpush1.msra.mxu0 0.0
        %567 = vmatprep.subr.mxu0 0.0
        %568 = vmatpush1.msra.mxu0 0.0
        %569 = vmatprep.subr.mxu0 0.0
        %570 = vmatpush1.msra.mxu0 0.0
        %571 = vmatprep.subr.mxu0 0.0
        %572 = vmatpush1.msra.mxu0 0.0
        %573 = vmatprep.subr.mxu0 0.0
        %574 = vmatpush1.msra.mxu0 0.0
        %575 = vmatprep.subr.mxu0 0.0
        %576 = vmatpush1.msra.mxu0 0.0
        %577 = vmatprep.subr.mxu0 0.0
        %578 = vmatpush1.msra.mxu0 0.0
        %579 = vmatprep.subr.mxu0 0.0
        %580 = vmatpush1.msra.mxu0 0.0
        %581 = vmatprep.subr.mxu0 0.0
        %582 = vmatpush1.msra.mxu0 0.0
        %583 = vmatprep.subr.mxu0 0.0
        %584 = vmatpush1.msra.mxu0 0.0
        %585 = vmatprep.subr.mxu0 0.0
        %586 = vmatpush1.msra.mxu0 0.0
        %587 = vmatprep.subr.mxu0 0.0
        %588 = vmatpush1.msra.mxu0 0.0
        %589 = vmatprep.subr.mxu0 0.0
        %590 = vmatpush1.msra.mxu0 0.0
        %591 = vmatprep.subr.mxu0 0.0
        %592 = vmatpush1.msra.mxu0 0.0
        %593 = vmatprep.subr.mxu0 0.0
        %594 = vmatpush1.msra.mxu0 0.0
        %595 = vmatprep.subr.mxu0 0.0
        %596 = vmatpush1.msra.mxu0 0.0
        %597 = vmatprep.subr.mxu0 0.0
        %598 = vmatpush1.msra.mxu0 0.0
        %599 = vmatprep.subr.mxu0 0.0
        %600 = vmatpush1.msra.mxu0 0.0
        %601 = vmatprep.subr.mxu0 0.0
        %602 = vmatpush1.msra.mxu0 0.0
        %603 = vmatprep.subr.mxu0 0.0
        %604 = vmatpush1.msra.mxu0 0.0
        %605 = vmatprep.mubr.f32.mxu0 0.0
        %606 = vmatmul.mubr.f32.gmra.mrb[0].mxu0 %v515
        %v607 = vpop.f32.mrb[0].mxu0
        %v608 = vadd.f32 0.0, %v607
        %v609 = vpop.f32.mrb[0].mxu0
        %610 = vmatprep.mubr.f32.mxu0 0.0
        %611 = vmatmul.mubr.f32.gmra.mrb[0].mxu0 %v518
        %v612 = vpop.f32.mrb[0].mxu0
        %v613 = vadd.f32 0.0, %v612
        %v614 = vpop.f32.mrb[0].mxu0
        %615 = vmatprep.mubr.f32.mxu0 0.0
        %616 = vmatmul.mubr.f32.gmra.mrb[0].mxu0 %v521
        %v617 = vpop.f32.mrb[0].mxu0
        %v618 = vadd.f32 0.0, %v617
        %v619 = vpop.f32.mrb[0].mxu0
        %620 = vmatprep.mubr.f32.mxu0 0.0
        %621 = vmatmul.mubr.f32.gmra.mrb[0].mxu0 %v524
        %v622 = vpop.f32.mrb[0].mxu0
        %v623 = vadd.f32 0.0, %v622
        %v624 = vpop.f32.mrb[0].mxu0
        %625 = vmatprep.mubr.f32.mxu0 0.0
        %626 = vmatmul.mubr.f32.gmra.mrb[0].mxu0 %v527
        %v627 = vpop.f32.mrb[0].mxu0
        %v628 = vadd.f32 0.0, %v627
        %v629 = vpop.f32.mrb[0].mxu0
        %630 = vmatprep.mubr.f32.mxu0 0.0
        %631 = vmatmul.mubr.f32.gmra.mrb[0].mxu0 %v530
        %v632 = vpop.f32.mrb[0].mxu0
        %v633 = vadd.f32 0.0, %v632
        %v634 = vpop.f32.mrb[0].mxu0
        %635 = vmatprep.mubr.f32.mxu0 0.0
        %636 = vmatmul.mubr.f32.gmra.mrb[0].mxu0 %v533
        %v637 = vpop.f32.mrb[0].mxu0
        %v638 = vadd.f32 0.0, %v637
        %v639 = vpop.f32.mrb[0].mxu0
        %640 = vmatprep.mubr.f32.mxu0 0.0
        %641 = vmatmul.mubr.f32.gmra.mrb[0].mxu0 %v536
        %v642 = vpop.f32.mrb[0].mxu0
        %v643 = vadd.f32 0.0, %v642
        %v644 = vpop.f32.mrb[0].mxu0
        %645 = vdwg.mxu0
        %v646 = vld [vmem:[#allocation2] sm:$0xff]
        %v647 = vld [vmem:[#allocation2 + $0x8] sm:$0xff]
        %v648 = vld [vmem:[#allocation2 + $0x10] sm:$0xff]
        %v649 = vld [vmem:[#allocation2 + $0x18] sm:$0xff]
        %v650 = vld [vmem:[#allocation2 + $0x20] sm:$0xff]
        %v651 = vld [vmem:[#allocation2 + $0x28] sm:$0xff]
        %v652 = vld [vmem:[#allocation2 + $0x30] sm:$0xff]
        %v653 = vld [vmem:[#allocation2 + $0x38] sm:$0xff]
        %v654 = vadd.f32 %v646, %v608
        %v655 = vadd.f32 %v647, %v613
        %v656 = vadd.f32 %v648, %v618
        %v657 = vadd.f32 %v649, %v623
        %v658 = vadd.f32 %v650, %v628
        %v659 = vadd.f32 %v651, %v633
        %v660 = vadd.f32 %v652, %v638
        %v661 = vadd.f32 %v653, %v643
        %662 = vst [vmem:[#allocation2] sm:$0xff] %v654
        %663 = vst [vmem:[#allocation2 + $0x8] sm:$0xff] %v655
        %664 = vst [vmem:[#allocation2 + $0x10] sm:$0xff] %v656
        %665 = vst [vmem:[#allocation2 + $0x18] sm:$0xff] %v657
        %666 = vst [vmem:[#allocation2 + $0x20] sm:$0xff] %v658
        %667 = vst [vmem:[#allocation2 + $0x28] sm:$0xff] %v659
        %668 = vst [vmem:[#allocation2 + $0x30] sm:$0xff] %v660
        %669 = vst [vmem:[#allocation2 + $0x38] sm:$0xff] %v661
        %s670 = sadd.s32 %s184, 1
        %s671 = smul.u32 %s670, 24
        %s672 = scalar_lea.vmem %s182, %s671
        %v673 = vld [vmem:[%s672] sm:$0xff]
        %v674 = vld [vmem:[%s672 + $0x8] sm:$0xff]
        %v675 = vld [vmem:[%s672 + $0x18] sm:$0xff]
        %v676 = vld [vmem:[%s672 + $0x20] sm:$0xff]
        %v677 = vld [vmem:[%s672 + $0x30] sm:$0xff]
        %v678 = vld [vmem:[%s672 + $0x38] sm:$0xff]
        %v679 = vld [vmem:[%s672 + $0x48] sm:$0xff]
        %v680 = vld [vmem:[%s672 + $0x50] sm:$0xff]
        %s681 = scalar_lea.vmem %s1, 12
        %v682 = vld [vmem:[%s681] sm:$0xf]
        %v684 = vsel %vm196, %v673, 0
        %v687 = vsel %vm196, %v674, 0
        %v690 = vsel %vm196, %v675, 0
        %v693 = vsel %vm196, %v676, 0
        %v696 = vsel %vm196, %v677, 0
        %v699 = vsel %vm196, %v678, 0
        %v702 = vsel %vm196, %v679, 0
        %v705 = vsel %vm196, %v680, 0
        %v708 = vsel %vm221, %v682, 0
        %710 = vmatprep.subr.mxu0 0.0
        %711 = vmatpush1.msra.mxu0 %v708
        %712 = vmatprep.subr.mxu0 0.0
        %713 = vmatpush1.msra.mxu0 0.0
        %714 = vmatprep.subr.mxu0 0.0
        %715 = vmatpush1.msra.mxu0 0.0
        %716 = vmatprep.subr.mxu0 0.0
        %717 = vmatpush1.msra.mxu0 0.0
        %718 = vmatprep.subr.mxu0 0.0
        %719 = vmatpush1.msra.mxu0 0.0
        %720 = vmatprep.subr.mxu0 0.0
        %721 = vmatpush1.msra.mxu0 0.0
        %722 = vmatprep.subr.mxu0 0.0
        %723 = vmatpush1.msra.mxu0 0.0
        %724 = vmatprep.subr.mxu0 0.0
        %725 = vmatpush1.msra.mxu0 0.0
        %726 = vmatprep.subr.mxu0 0.0
        %727 = vmatpush1.msra.mxu0 0.0
        %728 = vmatprep.subr.mxu0 0.0
        %729 = vmatpush1.msra.mxu0 0.0
        %730 = vmatprep.subr.mxu0 0.0
        %731 = vmatpush1.msra.mxu0 0.0
        %732 = vmatprep.subr.mxu0 0.0
        %733 = vmatpush1.msra.mxu0 0.0
        %734 = vmatprep.subr.mxu0 0.0
        %735 = vmatpush1.msra.mxu0 0.0
        %736 = vmatprep.subr.mxu0 0.0
        %737 = vmatpush1.msra.mxu0 0.0
        %738 = vmatprep.subr.mxu0 0.0
        %739 = vmatpush1.msra.mxu0 0.0
        %740 = vmatprep.subr.mxu0 0.0
        %741 = vmatpush1.msra.mxu0 0.0
        %742 = vmatprep.subr.mxu0 0.0
        %743 = vmatpush1.msra.mxu0 0.0
        %744 = vmatprep.subr.mxu0 0.0
        %745 = vmatpush1.msra.mxu0 0.0
        %746 = vmatprep.subr.mxu0 0.0
        %747 = vmatpush1.msra.mxu0 0.0
        %748 = vmatprep.subr.mxu0 0.0
        %749 = vmatpush1.msra.mxu0 0.0
        %750 = vmatprep.subr.mxu0 0.0
        %751 = vmatpush1.msra.mxu0 0.0
        %752 = vmatprep.subr.mxu0 0.0
        %753 = vmatpush1.msra.mxu0 0.0
        %754 = vmatprep.subr.mxu0 0.0
        %755 = vmatpush1.msra.mxu0 0.0
        %756 = vmatprep.subr.mxu0 0.0
        %757 = vmatpush1.msra.mxu0 0.0
        %758 = vmatprep.subr.mxu0 0.0
        %759 = vmatpush1.msra.mxu0 0.0
        %760 = vmatprep.subr.mxu0 0.0
        %761 = vmatpush1.msra.mxu0 0.0
        %762 = vmatprep.subr.mxu0 0.0
        %763 = vmatpush1.msra.mxu0 0.0
        %764 = vmatprep.subr.mxu0 0.0
        %765 = vmatpush1.msra.mxu0 0.0
        %766 = vmatprep.subr.mxu0 0.0
        %767 = vmatpush1.msra.mxu0 0.0
        %768 = vmatprep.subr.mxu0 0.0
        %769 = vmatpush1.msra.mxu0 0.0
        %770 = vmatprep.subr.mxu0 0.0
        %771 = vmatpush1.msra.mxu0 0.0
        %772 = vmatprep.subr.mxu0 0.0
        %773 = vmatpush1.msra.mxu0 0.0
        %774 = vmatprep.mubr.f32.mxu0 0.0
        %775 = vmatmul.mubr.f32.gmra.mrb[0].mxu0 %v684
        %v776 = vpop.f32.mrb[0].mxu0
        %v777 = vadd.f32 0.0, %v776
        %v778 = vpop.f32.mrb[0].mxu0
        %779 = vmatprep.mubr.f32.mxu0 0.0
        %780 = vmatmul.mubr.f32.gmra.mrb[0].mxu0 %v687
        %v781 = vpop.f32.mrb[0].mxu0
        %v782 = vadd.f32 0.0, %v781
        %v783 = vpop.f32.mrb[0].mxu0
        %784 = vmatprep.mubr.f32.mxu0 0.0
        %785 = vmatmul.mubr.f32.gmra.mrb[0].mxu0 %v690
        %v786 = vpop.f32.mrb[0].mxu0
        %v787 = vadd.f32 0.0, %v786
        %v788 = vpop.f32.mrb[0].mxu0
        %789 = vmatprep.mubr.f32.mxu0 0.0
        %790 = vmatmul.mubr.f32.gmra.mrb[0].mxu0 %v693
        %v791 = vpop.f32.mrb[0].mxu0
        %v792 = vadd.f32 0.0, %v791
        %v793 = vpop.f32.mrb[0].mxu0
        %794 = vmatprep.mubr.f32.mxu0 0.0
        %795 = vmatmul.mubr.f32.gmra.mrb[0].mxu0 %v696
        %v796 = vpop.f32.mrb[0].mxu0
        %v797 = vadd.f32 0.0, %v796
        %v798 = vpop.f32.mrb[0].mxu0
        %799 = vmatprep.mubr.f32.mxu0 0.0
        %800 = vmatmul.mubr.f32.gmra.mrb[0].mxu0 %v699
        %v801 = vpop.f32.mrb[0].mxu0
        %v802 = vadd.f32 0.0, %v801
        %v803 = vpop.f32.mrb[0].mxu0
        %804 = vmatprep.mubr.f32.mxu0 0.0
        %805 = vmatmul.mubr.f32.gmra.mrb[0].mxu0 %v702
        %v806 = vpop.f32.mrb[0].mxu0
        %v807 = vadd.f32 0.0, %v806
        %v808 = vpop.f32.mrb[0].mxu0
        %809 = vmatprep.mubr.f32.mxu0 0.0
        %810 = vmatmul.mubr.f32.gmra.mrb[0].mxu0 %v705
        %v811 = vpop.f32.mrb[0].mxu0
        %v812 = vadd.f32 0.0, %v811
        %v813 = vpop.f32.mrb[0].mxu0
        %814 = vdwg.mxu0
        %v815 = vld [vmem:[#allocation2] sm:$0xff]
        %v816 = vld [vmem:[#allocation2 + $0x8] sm:$0xff]
        %v817 = vld [vmem:[#allocation2 + $0x10] sm:$0xff]
        %v818 = vld [vmem:[#allocation2 + $0x18] sm:$0xff]
        %v819 = vld [vmem:[#allocation2 + $0x20] sm:$0xff]
        %v820 = vld [vmem:[#allocation2 + $0x28] sm:$0xff]
        %v821 = vld [vmem:[#allocation2 + $0x30] sm:$0xff]
        %v822 = vld [vmem:[#allocation2 + $0x38] sm:$0xff]
        %v823 = vadd.f32 %v815, %v777
        %v824 = vadd.f32 %v816, %v782
        %v825 = vadd.f32 %v817, %v787
        %v826 = vadd.f32 %v818, %v792
        %v827 = vadd.f32 %v819, %v797
        %v828 = vadd.f32 %v820, %v802
        %v829 = vadd.f32 %v821, %v807
        %v830 = vadd.f32 %v822, %v812
        %831 = vst [vmem:[#allocation2] sm:$0xff] %v823
        %832 = vst [vmem:[#allocation2 + $0x8] sm:$0xff] %v824
        %833 = vst [vmem:[#allocation2 + $0x10] sm:$0xff] %v825
        %834 = vst [vmem:[#allocation2 + $0x18] sm:$0xff] %v826
        %835 = vst [vmem:[#allocation2 + $0x20] sm:$0xff] %v827
        %836 = vst [vmem:[#allocation2 + $0x28] sm:$0xff] %v828
        %837 = vst [vmem:[#allocation2 + $0x30] sm:$0xff] %v829
        %838 = vst [vmem:[#allocation2 + $0x38] sm:$0xff] %v830
        %v839 = vld [vmem:[%s672 + $0x1] sm:$0xff]
        %v840 = vld [vmem:[%s672 + $0x9] sm:$0xff]
        %v841 = vld [vmem:[%s672 + $0x19] sm:$0xff]
        %v842 = vld [vmem:[%s672 + $0x21] sm:$0xff]
        %v843 = vld [vmem:[%s672 + $0x31] sm:$0xff]
        %v844 = vld [vmem:[%s672 + $0x39] sm:$0xff]
        %v845 = vld [vmem:[%s672 + $0x49] sm:$0xff]
        %v846 = vld [vmem:[%s672 + $0x51] sm:$0xff]
        %s847 = scalar_lea.vmem %s1, 16
        %v848 = vld [vmem:[%s847] sm:$0xf]
        %v850 = vsel %vm196, %v839, 0
        %v853 = vsel %vm196, %v840, 0
        %v856 = vsel %vm196, %v841, 0
        %v859 = vsel %vm196, %v842, 0
        %v862 = vsel %vm196, %v843, 0
        %v865 = vsel %vm196, %v844, 0
        %v868 = vsel %vm196, %v845, 0
        %v871 = vsel %vm196, %v846, 0
        %v874 = vsel %vm221, %v848, 0
        %876 = vmatprep.subr.mxu0 0.0
        %877 = vmatpush1.msra.mxu0 %v874
        %878 = vmatprep.subr.mxu0 0.0
        %879 = vmatpush1.msra.mxu0 0.0
        %880 = vmatprep.subr.mxu0 0.0
        %881 = vmatpush1.msra.mxu0 0.0
        %882 = vmatprep.subr.mxu0 0.0
        %883 = vmatpush1.msra.mxu0 0.0
        %884 = vmatprep.subr.mxu0 0.0
        %885 = vmatpush1.msra.mxu0 0.0
        %886 = vmatprep.subr.mxu0 0.0
        %887 = vmatpush1.msra.mxu0 0.0
        %888 = vmatprep.subr.mxu0 0.0
        %889 = vmatpush1.msra.mxu0 0.0
        %890 = vmatprep.subr.mxu0 0.0
        %891 = vmatpush1.msra.mxu0 0.0
        %892 = vmatprep.subr.mxu0 0.0
        %893 = vmatpush1.msra.mxu0 0.0
        %894 = vmatprep.subr.mxu0 0.0
        %895 = vmatpush1.msra.mxu0 0.0
        %896 = vmatprep.subr.mxu0 0.0
        %897 = vmatpush1.msra.mxu0 0.0
        %898 = vmatprep.subr.mxu0 0.0
        %899 = vmatpush1.msra.mxu0 0.0
        %900 = vmatprep.subr.mxu0 0.0
        %901 = vmatpush1.msra.mxu0 0.0
        %902 = vmatprep.subr.mxu0 0.0
        %903 = vmatpush1.msra.mxu0 0.0
        %904 = vmatprep.subr.mxu0 0.0
        %905 = vmatpush1.msra.mxu0 0.0
        %906 = vmatprep.subr.mxu0 0.0
        %907 = vmatpush1.msra.mxu0 0.0
        %908 = vmatprep.subr.mxu0 0.0
        %909 = vmatpush1.msra.mxu0 0.0
        %910 = vmatprep.subr.mxu0 0.0
        %911 = vmatpush1.msra.mxu0 0.0
        %912 = vmatprep.subr.mxu0 0.0
        %913 = vmatpush1.msra.mxu0 0.0
        %914 = vmatprep.subr.mxu0 0.0
        %915 = vmatpush1.msra.mxu0 0.0
        %916 = vmatprep.subr.mxu0 0.0
        %917 = vmatpush1.msra.mxu0 0.0
        %918 = vmatprep.subr.mxu0 0.0
        %919 = vmatpush1.msra.mxu0 0.0
        %920 = vmatprep.subr.mxu0 0.0
        %921 = vmatpush1.msra.mxu0 0.0
        %922 = vmatprep.subr.mxu0 0.0
        %923 = vmatpush1.msra.mxu0 0.0
        %924 = vmatprep.subr.mxu0 0.0
        %925 = vmatpush1.msra.mxu0 0.0
        %926 = vmatprep.subr.mxu0 0.0
        %927 = vmatpush1.msra.mxu0 0.0
        %928 = vmatprep.subr.mxu0 0.0
        %929 = vmatpush1.msra.mxu0 0.0
        %930 = vmatprep.subr.mxu0 0.0
        %931 = vmatpush1.msra.mxu0 0.0
        %932 = vmatprep.subr.mxu0 0.0
        %933 = vmatpush1.msra.mxu0 0.0
        %934 = vmatprep.subr.mxu0 0.0
        %935 = vmatpush1.msra.mxu0 0.0
        %936 = vmatprep.subr.mxu0 0.0
        %937 = vmatpush1.msra.mxu0 0.0
        %938 = vmatprep.subr.mxu0 0.0
        %939 = vmatpush1.msra.mxu0 0.0
        %940 = vmatprep.mubr.f32.mxu0 0.0
        %941 = vmatmul.mubr.f32.gmra.mrb[0].mxu0 %v850
        %v942 = vpop.f32.mrb[0].mxu0
        %v943 = vadd.f32 0.0, %v942
        %v944 = vpop.f32.mrb[0].mxu0
        %945 = vmatprep.mubr.f32.mxu0 0.0
        %946 = vmatmul.mubr.f32.gmra.mrb[0].mxu0 %v853
        %v947 = vpop.f32.mrb[0].mxu0
        %v948 = vadd.f32 0.0, %v947
        %v949 = vpop.f32.mrb[0].mxu0
        %950 = vmatprep.mubr.f32.mxu0 0.0
        %951 = vmatmul.mubr.f32.gmra.mrb[0].mxu0 %v856
        %v952 = vpop.f32.mrb[0].mxu0
        %v953 = vadd.f32 0.0, %v952
        %v954 = vpop.f32.mrb[0].mxu0
        %955 = vmatprep.mubr.f32.mxu0 0.0
        %956 = vmatmul.mubr.f32.gmra.mrb[0].mxu0 %v859
        %v957 = vpop.f32.mrb[0].mxu0
        %v958 = vadd.f32 0.0, %v957
        %v959 = vpop.f32.mrb[0].mxu0
        %960 = vmatprep.mubr.f32.mxu0 0.0
        %961 = vmatmul.mubr.f32.gmra.mrb[0].mxu0 %v862
        %v962 = vpop.f32.mrb[0].mxu0
        %v963 = vadd.f32 0.0, %v962
        %v964 = vpop.f32.mrb[0].mxu0
        %965 = vmatprep.mubr.f32.mxu0 0.0
        %966 = vmatmul.mubr.f32.gmra.mrb[0].mxu0 %v865
        %v967 = vpop.f32.mrb[0].mxu0
        %v968 = vadd.f32 0.0, %v967
        %v969 = vpop.f32.mrb[0].mxu0
        %970 = vmatprep.mubr.f32.mxu0 0.0
        %971 = vmatmul.mubr.f32.gmra.mrb[0].mxu0 %v868
        %v972 = vpop.f32.mrb[0].mxu0
        %v973 = vadd.f32 0.0, %v972
        %v974 = vpop.f32.mrb[0].mxu0
        %975 = vmatprep.mubr.f32.mxu0 0.0
        %976 = vmatmul.mubr.f32.gmra.mrb[0].mxu0 %v871
        %v977 = vpop.f32.mrb[0].mxu0
        %v978 = vadd.f32 0.0, %v977
        %v979 = vpop.f32.mrb[0].mxu0
        %980 = vdwg.mxu0
        %v981 = vld [vmem:[#allocation2] sm:$0xff]
        %v982 = vld [vmem:[#allocation2 + $0x8] sm:$0xff]
        %v983 = vld [vmem:[#allocation2 + $0x10] sm:$0xff]
        %v984 = vld [vmem:[#allocation2 + $0x18] sm:$0xff]
        %v985 = vld [vmem:[#allocation2 + $0x20] sm:$0xff]
        %v986 = vld [vmem:[#allocation2 + $0x28] sm:$0xff]
        %v987 = vld [vmem:[#allocation2 + $0x30] sm:$0xff]
        %v988 = vld [vmem:[#allocation2 + $0x38] sm:$0xff]
        %v989 = vadd.f32 %v981, %v943
        %v990 = vadd.f32 %v982, %v948
        %v991 = vadd.f32 %v983, %v953
        %v992 = vadd.f32 %v984, %v958
        %v993 = vadd.f32 %v985, %v963
        %v994 = vadd.f32 %v986, %v968
        %v995 = vadd.f32 %v987, %v973
        %v996 = vadd.f32 %v988, %v978
        %997 = vst [vmem:[#allocation2] sm:$0xff] %v989
        %998 = vst [vmem:[#allocation2 + $0x8] sm:$0xff] %v990
        %999 = vst [vmem:[#allocation2 + $0x10] sm:$0xff] %v991
        %1000 = vst [vmem:[#allocation2 + $0x18] sm:$0xff] %v992
        %1001 = vst [vmem:[#allocation2 + $0x20] sm:$0xff] %v993
        %1002 = vst [vmem:[#allocation2 + $0x28] sm:$0xff] %v994
        %1003 = vst [vmem:[#allocation2 + $0x30] sm:$0xff] %v995
        %1004 = vst [vmem:[#allocation2 + $0x38] sm:$0xff] %v996
        %v1005 = vld [vmem:[%s672 + $0x2] sm:$0xff]
        %v1006 = vld [vmem:[%s672 + $0xa] sm:$0xff]
        %v1007 = vld [vmem:[%s672 + $0x1a] sm:$0xff]
        %v1008 = vld [vmem:[%s672 + $0x22] sm:$0xff]
        %v1009 = vld [vmem:[%s672 + $0x32] sm:$0xff]
        %v1010 = vld [vmem:[%s672 + $0x3a] sm:$0xff]
        %v1011 = vld [vmem:[%s672 + $0x4a] sm:$0xff]
        %v1012 = vld [vmem:[%s672 + $0x52] sm:$0xff]
        %s1013 = scalar_lea.vmem %s1, 20
        %v1014 = vld [vmem:[%s1013] sm:$0xf]
        %v1016 = vsel %vm196, %v1005, 0
        %v1019 = vsel %vm196, %v1006, 0
        %v1022 = vsel %vm196, %v1007, 0
        %v1025 = vsel %vm196, %v1008, 0
        %v1028 = vsel %vm196, %v1009, 0
        %v1031 = vsel %vm196, %v1010, 0
        %v1034 = vsel %vm196, %v1011, 0
        %v1037 = vsel %vm196, %v1012, 0
        %v1040 = vsel %vm221, %v1014, 0
        %1042 = vmatprep.subr.mxu0 0.0
        %1043 = vmatpush1.msra.mxu0 %v1040
        %1044 = vmatprep.subr.mxu0 0.0
        %1045 = vmatpush1.msra.mxu0 0.0
        %1046 = vmatprep.subr.mxu0 0.0
        %1047 = vmatpush1.msra.mxu0 0.0
        %1048 = vmatprep.subr.mxu0 0.0
        %1049 = vmatpush1.msra.mxu0 0.0
        %1050 = vmatprep.subr.mxu0 0.0
        %1051 = vmatpush1.msra.mxu0 0.0
        %1052 = vmatprep.subr.mxu0 0.0
        %1053 = vmatpush1.msra.mxu0 0.0
        %1054 = vmatprep.subr.mxu0 0.0
        %1055 = vmatpush1.msra.mxu0 0.0
        %1056 = vmatprep.subr.mxu0 0.0
        %1057 = vmatpush1.msra.mxu0 0.0
        %1058 = vmatprep.subr.mxu0 0.0
        %1059 = vmatpush1.msra.mxu0 0.0
        %1060 = vmatprep.subr.mxu0 0.0
        %1061 = vmatpush1.msra.mxu0 0.0
        %1062 = vmatprep.subr.mxu0 0.0
        %1063 = vmatpush1.msra.mxu0 0.0
        %1064 = vmatprep.subr.mxu0 0.0
        %1065 = vmatpush1.msra.mxu0 0.0
        %1066 = vmatprep.subr.mxu0 0.0
        %1067 = vmatpush1.msra.mxu0 0.0
        %1068 = vmatprep.subr.mxu0 0.0
        %1069 = vmatpush1.msra.mxu0 0.0
        %1070 = vmatprep.subr.mxu0 0.0
        %1071 = vmatpush1.msra.mxu0 0.0
        %1072 = vmatprep.subr.mxu0 0.0
        %1073 = vmatpush1.msra.mxu0 0.0
        %1074 = vmatprep.subr.mxu0 0.0
        %1075 = vmatpush1.msra.mxu0 0.0
        %1076 = vmatprep.subr.mxu0 0.0
        %1077 = vmatpush1.msra.mxu0 0.0
        %1078 = vmatprep.subr.mxu0 0.0
        %1079 = vmatpush1.msra.mxu0 0.0
        %1080 = vmatprep.subr.mxu0 0.0
        %1081 = vmatpush1.msra.mxu0 0.0
        %1082 = vmatprep.subr.mxu0 0.0
        %1083 = vmatpush1.msra.mxu0 0.0
        %1084 = vmatprep.subr.mxu0 0.0
        %1085 = vmatpush1.msra.mxu0 0.0
        %1086 = vmatprep.subr.mxu0 0.0
        %1087 = vmatpush1.msra.mxu0 0.0
        %1088 = vmatprep.subr.mxu0 0.0
        %1089 = vmatpush1.msra.mxu0 0.0
        %1090 = vmatprep.subr.mxu0 0.0
        %1091 = vmatpush1.msra.mxu0 0.0
        %1092 = vmatprep.subr.mxu0 0.0
        %1093 = vmatpush1.msra.mxu0 0.0
        %1094 = vmatprep.subr.mxu0 0.0
        %1095 = vmatpush1.msra.mxu0 0.0
        %1096 = vmatprep.subr.mxu0 0.0
        %1097 = vmatpush1.msra.mxu0 0.0
        %1098 = vmatprep.subr.mxu0 0.0
        %1099 = vmatpush1.msra.mxu0 0.0
        %1100 = vmatprep.subr.mxu0 0.0
        %1101 = vmatpush1.msra.mxu0 0.0
        %1102 = vmatprep.subr.mxu0 0.0
        %1103 = vmatpush1.msra.mxu0 0.0
        %1104 = vmatprep.subr.mxu0 0.0
        %1105 = vmatpush1.msra.mxu0 0.0
        %1106 = vmatprep.mubr.f32.mxu0 0.0
        %1107 = vmatmul.mubr.f32.gmra.mrb[0].mxu0 %v1016
        %v1108 = vpop.f32.mrb[0].mxu0
        %v1109 = vadd.f32 0.0, %v1108
        %v1110 = vpop.f32.mrb[0].mxu0
        %1111 = vmatprep.mubr.f32.mxu0 0.0
        %1112 = vmatmul.mubr.f32.gmra.mrb[0].mxu0 %v1019
        %v1113 = vpop.f32.mrb[0].mxu0
        %v1114 = vadd.f32 0.0, %v1113
        %v1115 = vpop.f32.mrb[0].mxu0
        %1116 = vmatprep.mubr.f32.mxu0 0.0
        %1117 = vmatmul.mubr.f32.gmra.mrb[0].mxu0 %v1022
        %v1118 = vpop.f32.mrb[0].mxu0
        %v1119 = vadd.f32 0.0, %v1118
        %v1120 = vpop.f32.mrb[0].mxu0
        %1121 = vmatprep.mubr.f32.mxu0 0.0
        %1122 = vmatmul.mubr.f32.gmra.mrb[0].mxu0 %v1025
        %v1123 = vpop.f32.mrb[0].mxu0
        %v1124 = vadd.f32 0.0, %v1123
        %v1125 = vpop.f32.mrb[0].mxu0
        %1126 = vmatprep.mubr.f32.mxu0 0.0
        %1127 = vmatmul.mubr.f32.gmra.mrb[0].mxu0 %v1028
        %v1128 = vpop.f32.mrb[0].mxu0
        %v1129 = vadd.f32 0.0, %v1128
        %v1130 = vpop.f32.mrb[0].mxu0
        %1131 = vmatprep.mubr.f32.mxu0 0.0
        %1132 = vmatmul.mubr.f32.gmra.mrb[0].mxu0 %v1031
        %v1133 = vpop.f32.mrb[0].mxu0
        %v1134 = vadd.f32 0.0, %v1133
        %v1135 = vpop.f32.mrb[0].mxu0
        %1136 = vmatprep.mubr.f32.mxu0 0.0
        %1137 = vmatmul.mubr.f32.gmra.mrb[0].mxu0 %v1034
        %v1138 = vpop.f32.mrb[0].mxu0
        %v1139 = vadd.f32 0.0, %v1138
        %v1140 = vpop.f32.mrb[0].mxu0
        %1141 = vmatprep.mubr.f32.mxu0 0.0
        %1142 = vmatmul.mubr.f32.gmra.mrb[0].mxu0 %v1037
        %v1143 = vpop.f32.mrb[0].mxu0
        %v1144 = vadd.f32 0.0, %v1143
        %v1145 = vpop.f32.mrb[0].mxu0
        %1146 = vdwg.mxu0
        %v1147 = vld [vmem:[#allocation2] sm:$0xff]
        %v1148 = vld [vmem:[#allocation2 + $0x8] sm:$0xff]
        %v1149 = vld [vmem:[#allocation2 + $0x10] sm:$0xff]
        %v1150 = vld [vmem:[#allocation2 + $0x18] sm:$0xff]
        %v1151 = vld [vmem:[#allocation2 + $0x20] sm:$0xff]
        %v1152 = vld [vmem:[#allocation2 + $0x28] sm:$0xff]
        %v1153 = vld [vmem:[#allocation2 + $0x30] sm:$0xff]
        %v1154 = vld [vmem:[#allocation2 + $0x38] sm:$0xff]
        %v1155 = vadd.f32 %v1147, %v1109
        %v1156 = vadd.f32 %v1148, %v1114
        %v1157 = vadd.f32 %v1149, %v1119
        %v1158 = vadd.f32 %v1150, %v1124
        %v1159 = vadd.f32 %v1151, %v1129
        %v1160 = vadd.f32 %v1152, %v1134
        %v1161 = vadd.f32 %v1153, %v1139
        %v1162 = vadd.f32 %v1154, %v1144
        %1163 = vst [vmem:[#allocation2] sm:$0xff] %v1155
        %1164 = vst [vmem:[#allocation2 + $0x8] sm:$0xff] %v1156
        %1165 = vst [vmem:[#allocation2 + $0x10] sm:$0xff] %v1157
        %1166 = vst [vmem:[#allocation2 + $0x18] sm:$0xff] %v1158
        %1167 = vst [vmem:[#allocation2 + $0x20] sm:$0xff] %v1159
        %1168 = vst [vmem:[#allocation2 + $0x28] sm:$0xff] %v1160
        %1169 = vst [vmem:[#allocation2 + $0x30] sm:$0xff] %v1161
        %1170 = vst [vmem:[#allocation2 + $0x38] sm:$0xff] %v1162
        %s1171 = sadd.s32 %s184, 2
        %s1172 = smul.u32 %s1171, 24
        %s1173 = scalar_lea.vmem %s182, %s1172
        %v1174 = vld [vmem:[%s1173] sm:$0xff]
        %v1175 = vld [vmem:[%s1173 + $0x8] sm:$0xff]
        %v1176 = vld [vmem:[%s1173 + $0x18] sm:$0xff]
        %v1177 = vld [vmem:[%s1173 + $0x20] sm:$0xff]
        %v1178 = vld [vmem:[%s1173 + $0x30] sm:$0xff]
        %v1179 = vld [vmem:[%s1173 + $0x38] sm:$0xff]
        %v1180 = vld [vmem:[%s1173 + $0x48] sm:$0xff]
        %v1181 = vld [vmem:[%s1173 + $0x50] sm:$0xff]
        %s1182 = scalar_lea.vmem %s1, 24
        %v1183 = vld [vmem:[%s1182] sm:$0xf]
        %v1185 = vsel %vm196, %v1174, 0
        %v1188 = vsel %vm196, %v1175, 0
        %v1191 = vsel %vm196, %v1176, 0
        %v1194 = vsel %vm196, %v1177, 0
        %v1197 = vsel %vm196, %v1178, 0
        %v1200 = vsel %vm196, %v1179, 0
        %v1203 = vsel %vm196, %v1180, 0
        %v1206 = vsel %vm196, %v1181, 0
        %v1209 = vsel %vm221, %v1183, 0
        %1211 = vmatprep.subr.mxu0 0.0
        %1212 = vmatpush1.msra.mxu0 %v1209
        %1213 = vmatprep.subr.mxu0 0.0
        %1214 = vmatpush1.msra.mxu0 0.0
        %1215 = vmatprep.subr.mxu0 0.0
        %1216 = vmatpush1.msra.mxu0 0.0
        %1217 = vmatprep.subr.mxu0 0.0
        %1218 = vmatpush1.msra.mxu0 0.0
        %1219 = vmatprep.subr.mxu0 0.0
        %1220 = vmatpush1.msra.mxu0 0.0
        %1221 = vmatprep.subr.mxu0 0.0
        %1222 = vmatpush1.msra.mxu0 0.0
        %1223 = vmatprep.subr.mxu0 0.0
        %1224 = vmatpush1.msra.mxu0 0.0
        %1225 = vmatprep.subr.mxu0 0.0
        %1226 = vmatpush1.msra.mxu0 0.0
        %1227 = vmatprep.subr.mxu0 0.0
        %1228 = vmatpush1.msra.mxu0 0.0
        %1229 = vmatprep.subr.mxu0 0.0
        %1230 = vmatpush1.msra.mxu0 0.0
        %1231 = vmatprep.subr.mxu0 0.0
        %1232 = vmatpush1.msra.mxu0 0.0
        %1233 = vmatprep.subr.mxu0 0.0
        %1234 = vmatpush1.msra.mxu0 0.0
        %1235 = vmatprep.subr.mxu0 0.0
        %1236 = vmatpush1.msra.mxu0 0.0
        %1237 = vmatprep.subr.mxu0 0.0
        %1238 = vmatpush1.msra.mxu0 0.0
        %1239 = vmatprep.subr.mxu0 0.0
        %1240 = vmatpush1.msra.mxu0 0.0
        %1241 = vmatprep.subr.mxu0 0.0
        %1242 = vmatpush1.msra.mxu0 0.0
        %1243 = vmatprep.subr.mxu0 0.0
        %1244 = vmatpush1.msra.mxu0 0.0
        %1245 = vmatprep.subr.mxu0 0.0
        %1246 = vmatpush1.msra.mxu0 0.0
        %1247 = vmatprep.subr.mxu0 0.0
        %1248 = vmatpush1.msra.mxu0 0.0
        %1249 = vmatprep.subr.mxu0 0.0
        %1250 = vmatpush1.msra.mxu0 0.0
        %1251 = vmatprep.subr.mxu0 0.0
        %1252 = vmatpush1.msra.mxu0 0.0
        %1253 = vmatprep.subr.mxu0 0.0
        %1254 = vmatpush1.msra.mxu0 0.0
        %1255 = vmatprep.subr.mxu0 0.0
        %1256 = vmatpush1.msra.mxu0 0.0
        %1257 = vmatprep.subr.mxu0 0.0
        %1258 = vmatpush1.msra.mxu0 0.0
        %1259 = vmatprep.subr.mxu0 0.0
        %1260 = vmatpush1.msra.mxu0 0.0
        %1261 = vmatprep.subr.mxu0 0.0
        %1262 = vmatpush1.msra.mxu0 0.0
        %1263 = vmatprep.subr.mxu0 0.0
        %1264 = vmatpush1.msra.mxu0 0.0
        %1265 = vmatprep.subr.mxu0 0.0
        %1266 = vmatpush1.msra.mxu0 0.0
        %1267 = vmatprep.subr.mxu0 0.0
        %1268 = vmatpush1.msra.mxu0 0.0
        %1269 = vmatprep.subr.mxu0 0.0
        %1270 = vmatpush1.msra.mxu0 0.0
        %1271 = vmatprep.subr.mxu0 0.0
        %1272 = vmatpush1.msra.mxu0 0.0
        %1273 = vmatprep.subr.mxu0 0.0
        %1274 = vmatpush1.msra.mxu0 0.0
        %1275 = vmatprep.mubr.f32.mxu0 0.0
        %1276 = vmatmul.mubr.f32.gmra.mrb[0].mxu0 %v1185
        %v1277 = vpop.f32.mrb[0].mxu0
        %v1278 = vadd.f32 0.0, %v1277
        %v1279 = vpop.f32.mrb[0].mxu0
        %1280 = vmatprep.mubr.f32.mxu0 0.0
        %1281 = vmatmul.mubr.f32.gmra.mrb[0].mxu0 %v1188
        %v1282 = vpop.f32.mrb[0].mxu0
        %v1283 = vadd.f32 0.0, %v1282
        %v1284 = vpop.f32.mrb[0].mxu0
        %1285 = vmatprep.mubr.f32.mxu0 0.0
        %1286 = vmatmul.mubr.f32.gmra.mrb[0].mxu0 %v1191
        %v1287 = vpop.f32.mrb[0].mxu0
        %v1288 = vadd.f32 0.0, %v1287
        %v1289 = vpop.f32.mrb[0].mxu0
        %1290 = vmatprep.mubr.f32.mxu0 0.0
        %1291 = vmatmul.mubr.f32.gmra.mrb[0].mxu0 %v1194
        %v1292 = vpop.f32.mrb[0].mxu0
        %v1293 = vadd.f32 0.0, %v1292
        %v1294 = vpop.f32.mrb[0].mxu0
        %1295 = vmatprep.mubr.f32.mxu0 0.0
        %1296 = vmatmul.mubr.f32.gmra.mrb[0].mxu0 %v1197
        %v1297 = vpop.f32.mrb[0].mxu0
        %v1298 = vadd.f32 0.0, %v1297
        %v1299 = vpop.f32.mrb[0].mxu0
        %1300 = vmatprep.mubr.f32.mxu0 0.0
        %1301 = vmatmul.mubr.f32.gmra.mrb[0].mxu0 %v1200
        %v1302 = vpop.f32.mrb[0].mxu0
        %v1303 = vadd.f32 0.0, %v1302
        %v1304 = vpop.f32.mrb[0].mxu0
        %1305 = vmatprep.mubr.f32.mxu0 0.0
        %1306 = vmatmul.mubr.f32.gmra.mrb[0].mxu0 %v1203
        %v1307 = vpop.f32.mrb[0].mxu0
        %v1308 = vadd.f32 0.0, %v1307
        %v1309 = vpop.f32.mrb[0].mxu0
        %1310 = vmatprep.mubr.f32.mxu0 0.0
        %1311 = vmatmul.mubr.f32.gmra.mrb[0].mxu0 %v1206
        %v1312 = vpop.f32.mrb[0].mxu0
        %v1313 = vadd.f32 0.0, %v1312
        %v1314 = vpop.f32.mrb[0].mxu0
        %1315 = vdwg.mxu0
        %v1316 = vld [vmem:[#allocation2] sm:$0xff]
        %v1317 = vld [vmem:[#allocation2 + $0x8] sm:$0xff]
        %v1318 = vld [vmem:[#allocation2 + $0x10] sm:$0xff]
        %v1319 = vld [vmem:[#allocation2 + $0x18] sm:$0xff]
        %v1320 = vld [vmem:[#allocation2 + $0x20] sm:$0xff]
        %v1321 = vld [vmem:[#allocation2 + $0x28] sm:$0xff]
        %v1322 = vld [vmem:[#allocation2 + $0x30] sm:$0xff]
        %v1323 = vld [vmem:[#allocation2 + $0x38] sm:$0xff]
        %v1324 = vadd.f32 %v1316, %v1278
        %v1325 = vadd.f32 %v1317, %v1283
        %v1326 = vadd.f32 %v1318, %v1288
        %v1327 = vadd.f32 %v1319, %v1293
        %v1328 = vadd.f32 %v1320, %v1298
        %v1329 = vadd.f32 %v1321, %v1303
        %v1330 = vadd.f32 %v1322, %v1308
        %v1331 = vadd.f32 %v1323, %v1313
        %1332 = vst [vmem:[#allocation2] sm:$0xff] %v1324
        %1333 = vst [vmem:[#allocation2 + $0x8] sm:$0xff] %v1325
        %1334 = vst [vmem:[#allocation2 + $0x10] sm:$0xff] %v1326
        %1335 = vst [vmem:[#allocation2 + $0x18] sm:$0xff] %v1327
        %1336 = vst [vmem:[#allocation2 + $0x20] sm:$0xff] %v1328
        %1337 = vst [vmem:[#allocation2 + $0x28] sm:$0xff] %v1329
        %1338 = vst [vmem:[#allocation2 + $0x30] sm:$0xff] %v1330
        %1339 = vst [vmem:[#allocation2 + $0x38] sm:$0xff] %v1331
        %v1340 = vld [vmem:[%s1173 + $0x1] sm:$0xff]
        %v1341 = vld [vmem:[%s1173 + $0x9] sm:$0xff]
        %v1342 = vld [vmem:[%s1173 + $0x19] sm:$0xff]
        %v1343 = vld [vmem:[%s1173 + $0x21] sm:$0xff]
        %v1344 = vld [vmem:[%s1173 + $0x31] sm:$0xff]
        %v1345 = vld [vmem:[%s1173 + $0x39] sm:$0xff]
        %v1346 = vld [vmem:[%s1173 + $0x49] sm:$0xff]
        %v1347 = vld [vmem:[%s1173 + $0x51] sm:$0xff]
        %s1348 = scalar_lea.vmem %s1, 28
        %v1349 = vld [vmem:[%s1348] sm:$0xf]
        %v1351 = vsel %vm196, %v1340, 0
        %v1354 = vsel %vm196, %v1341, 0
        %v1357 = vsel %vm196, %v1342, 0
        %v1360 = vsel %vm196, %v1343, 0
        %v1363 = vsel %vm196, %v1344, 0
        %v1366 = vsel %vm196, %v1345, 0
        %v1369 = vsel %vm196, %v1346, 0
        %v1372 = vsel %vm196, %v1347, 0
        %v1375 = vsel %vm221, %v1349, 0
        %1377 = vmatprep.subr.mxu0 0.0
        %1378 = vmatpush1.msra.mxu0 %v1375
        %1379 = vmatprep.subr.mxu0 0.0
        %1380 = vmatpush1.msra.mxu0 0.0
        %1381 = vmatprep.subr.mxu0 0.0
        %1382 = vmatpush1.msra.mxu0 0.0
        %1383 = vmatprep.subr.mxu0 0.0
        %1384 = vmatpush1.msra.mxu0 0.0
        %1385 = vmatprep.subr.mxu0 0.0
        %1386 = vmatpush1.msra.mxu0 0.0
        %1387 = vmatprep.subr.mxu0 0.0
        %1388 = vmatpush1.msra.mxu0 0.0
        %1389 = vmatprep.subr.mxu0 0.0
        %1390 = vmatpush1.msra.mxu0 0.0
        %1391 = vmatprep.subr.mxu0 0.0
        %1392 = vmatpush1.msra.mxu0 0.0
        %1393 = vmatprep.subr.mxu0 0.0
        %1394 = vmatpush1.msra.mxu0 0.0
        %1395 = vmatprep.subr.mxu0 0.0
        %1396 = vmatpush1.msra.mxu0 0.0
        %1397 = vmatprep.subr.mxu0 0.0
        %1398 = vmatpush1.msra.mxu0 0.0
        %1399 = vmatprep.subr.mxu0 0.0
        %1400 = vmatpush1.msra.mxu0 0.0
        %1401 = vmatprep.subr.mxu0 0.0
        %1402 = vmatpush1.msra.mxu0 0.0
        %1403 = vmatprep.subr.mxu0 0.0
        %1404 = vmatpush1.msra.mxu0 0.0
        %1405 = vmatprep.subr.mxu0 0.0
        %1406 = vmatpush1.msra.mxu0 0.0
        %1407 = vmatprep.subr.mxu0 0.0
        %1408 = vmatpush1.msra.mxu0 0.0
        %1409 = vmatprep.subr.mxu0 0.0
        %1410 = vmatpush1.msra.mxu0 0.0
        %1411 = vmatprep.subr.mxu0 0.0
        %1412 = vmatpush1.msra.mxu0 0.0
        %1413 = vmatprep.subr.mxu0 0.0
        %1414 = vmatpush1.msra.mxu0 0.0
        %1415 = vmatprep.subr.mxu0 0.0
        %1416 = vmatpush1.msra.mxu0 0.0
        %1417 = vmatprep.subr.mxu0 0.0
        %1418 = vmatpush1.msra.mxu0 0.0
        %1419 = vmatprep.subr.mxu0 0.0
        %1420 = vmatpush1.msra.mxu0 0.0
        %1421 = vmatprep.subr.mxu0 0.0
        %1422 = vmatpush1.msra.mxu0 0.0
        %1423 = vmatprep.subr.mxu0 0.0
        %1424 = vmatpush1.msra.mxu0 0.0
        %1425 = vmatprep.subr.mxu0 0.0
        %1426 = vmatpush1.msra.mxu0 0.0
        %1427 = vmatprep.subr.mxu0 0.0
        %1428 = vmatpush1.msra.mxu0 0.0
        %1429 = vmatprep.subr.mxu0 0.0
        %1430 = vmatpush1.msra.mxu0 0.0
        %1431 = vmatprep.subr.mxu0 0.0
        %1432 = vmatpush1.msra.mxu0 0.0
        %1433 = vmatprep.subr.mxu0 0.0
        %1434 = vmatpush1.msra.mxu0 0.0
        %1435 = vmatprep.subr.mxu0 0.0
        %1436 = vmatpush1.msra.mxu0 0.0
        %1437 = vmatprep.subr.mxu0 0.0
        %1438 = vmatpush1.msra.mxu0 0.0
        %1439 = vmatprep.subr.mxu0 0.0
        %1440 = vmatpush1.msra.mxu0 0.0
        %1441 = vmatprep.mubr.f32.mxu0 0.0
        %1442 = vmatmul.mubr.f32.gmra.mrb[0].mxu0 %v1351
        %v1443 = vpop.f32.mrb[0].mxu0
        %v1444 = vadd.f32 0.0, %v1443
        %v1445 = vpop.f32.mrb[0].mxu0
        %1446 = vmatprep.mubr.f32.mxu0 0.0
        %1447 = vmatmul.mubr.f32.gmra.mrb[0].mxu0 %v1354
        %v1448 = vpop.f32.mrb[0].mxu0
        %v1449 = vadd.f32 0.0, %v1448
        %v1450 = vpop.f32.mrb[0].mxu0
        %1451 = vmatprep.mubr.f32.mxu0 0.0
        %1452 = vmatmul.mubr.f32.gmra.mrb[0].mxu0 %v1357
        %v1453 = vpop.f32.mrb[0].mxu0
        %v1454 = vadd.f32 0.0, %v1453
        %v1455 = vpop.f32.mrb[0].mxu0
        %1456 = vmatprep.mubr.f32.mxu0 0.0
        %1457 = vmatmul.mubr.f32.gmra.mrb[0].mxu0 %v1360
        %v1458 = vpop.f32.mrb[0].mxu0
        %v1459 = vadd.f32 0.0, %v1458
        %v1460 = vpop.f32.mrb[0].mxu0
        %1461 = vmatprep.mubr.f32.mxu0 0.0
        %1462 = vmatmul.mubr.f32.gmra.mrb[0].mxu0 %v1363
        %v1463 = vpop.f32.mrb[0].mxu0
        %v1464 = vadd.f32 0.0, %v1463
        %v1465 = vpop.f32.mrb[0].mxu0
        %1466 = vmatprep.mubr.f32.mxu0 0.0
        %1467 = vmatmul.mubr.f32.gmra.mrb[0].mxu0 %v1366
        %v1468 = vpop.f32.mrb[0].mxu0
        %v1469 = vadd.f32 0.0, %v1468
        %v1470 = vpop.f32.mrb[0].mxu0
        %1471 = vmatprep.mubr.f32.mxu0 0.0
        %1472 = vmatmul.mubr.f32.gmra.mrb[0].mxu0 %v1369
        %v1473 = vpop.f32.mrb[0].mxu0
        %v1474 = vadd.f32 0.0, %v1473
        %v1475 = vpop.f32.mrb[0].mxu0
        %1476 = vmatprep.mubr.f32.mxu0 0.0
        %1477 = vmatmul.mubr.f32.gmra.mrb[0].mxu0 %v1372
        %v1478 = vpop.f32.mrb[0].mxu0
        %v1479 = vadd.f32 0.0, %v1478
        %v1480 = vpop.f32.mrb[0].mxu0
        %1481 = vdwg.mxu0
        %v1482 = vld [vmem:[#allocation2] sm:$0xff]
        %v1483 = vld [vmem:[#allocation2 + $0x8] sm:$0xff]
        %v1484 = vld [vmem:[#allocation2 + $0x10] sm:$0xff]
        %v1485 = vld [vmem:[#allocation2 + $0x18] sm:$0xff]
        %v1486 = vld [vmem:[#allocation2 + $0x20] sm:$0xff]
        %v1487 = vld [vmem:[#allocation2 + $0x28] sm:$0xff]
        %v1488 = vld [vmem:[#allocation2 + $0x30] sm:$0xff]
        %v1489 = vld [vmem:[#allocation2 + $0x38] sm:$0xff]
        %v1490 = vadd.f32 %v1482, %v1444
        %v1491 = vadd.f32 %v1483, %v1449
        %v1492 = vadd.f32 %v1484, %v1454
        %v1493 = vadd.f32 %v1485, %v1459
        %v1494 = vadd.f32 %v1486, %v1464
        %v1495 = vadd.f32 %v1487, %v1469
        %v1496 = vadd.f32 %v1488, %v1474
        %v1497 = vadd.f32 %v1489, %v1479
        %1498 = vst [vmem:[#allocation2] sm:$0xff] %v1490
        %1499 = vst [vmem:[#allocation2 + $0x8] sm:$0xff] %v1491
        %1500 = vst [vmem:[#allocation2 + $0x10] sm:$0xff] %v1492
        %1501 = vst [vmem:[#allocation2 + $0x18] sm:$0xff] %v1493
        %1502 = vst [vmem:[#allocation2 + $0x20] sm:$0xff] %v1494
        %1503 = vst [vmem:[#allocation2 + $0x28] sm:$0xff] %v1495
        %1504 = vst [vmem:[#allocation2 + $0x30] sm:$0xff] %v1496
        %1505 = vst [vmem:[#allocation2 + $0x38] sm:$0xff] %v1497
        %v1506 = vld [vmem:[%s1173 + $0x2] sm:$0xff]
        %v1507 = vld [vmem:[%s1173 + $0xa] sm:$0xff]
        %v1508 = vld [vmem:[%s1173 + $0x1a] sm:$0xff]
        %v1509 = vld [vmem:[%s1173 + $0x22] sm:$0xff]
        %v1510 = vld [vmem:[%s1173 + $0x32] sm:$0xff]
        %v1511 = vld [vmem:[%s1173 + $0x3a] sm:$0xff]
        %v1512 = vld [vmem:[%s1173 + $0x4a] sm:$0xff]
        %v1513 = vld [vmem:[%s1173 + $0x52] sm:$0xff]
        %s1514 = scalar_lea.vmem %s1, 32
        %v1515 = vld [vmem:[%s1514] sm:$0xf]
        %v1517 = vsel %vm196, %v1506, 0
        %v1520 = vsel %vm196, %v1507, 0
        %v1523 = vsel %vm196, %v1508, 0
        %v1526 = vsel %vm196, %v1509, 0
        %v1529 = vsel %vm196, %v1510, 0
        %v1532 = vsel %vm196, %v1511, 0
        %v1535 = vsel %vm196, %v1512, 0
        %v1538 = vsel %vm196, %v1513, 0
        %v1541 = vsel %vm221, %v1515, 0
        %1543 = vmatprep.subr.mxu0 0.0
        %1544 = vmatpush1.msra.mxu0 %v1541
        %1545 = vmatprep.subr.mxu0 0.0
        %1546 = vmatpush1.msra.mxu0 0.0
        %1547 = vmatprep.subr.mxu0 0.0
        %1548 = vmatpush1.msra.mxu0 0.0
        %1549 = vmatprep.subr.mxu0 0.0
        %1550 = vmatpush1.msra.mxu0 0.0
        %1551 = vmatprep.subr.mxu0 0.0
        %1552 = vmatpush1.msra.mxu0 0.0
        %1553 = vmatprep.subr.mxu0 0.0
        %1554 = vmatpush1.msra.mxu0 0.0
        %1555 = vmatprep.subr.mxu0 0.0
        %1556 = vmatpush1.msra.mxu0 0.0
        %1557 = vmatprep.subr.mxu0 0.0
        %1558 = vmatpush1.msra.mxu0 0.0
        %1559 = vmatprep.subr.mxu0 0.0
        %1560 = vmatpush1.msra.mxu0 0.0
        %1561 = vmatprep.subr.mxu0 0.0
        %1562 = vmatpush1.msra.mxu0 0.0
        %1563 = vmatprep.subr.mxu0 0.0
        %1564 = vmatpush1.msra.mxu0 0.0
        %1565 = vmatprep.subr.mxu0 0.0
        %1566 = vmatpush1.msra.mxu0 0.0
        %1567 = vmatprep.subr.mxu0 0.0
        %1568 = vmatpush1.msra.mxu0 0.0
        %1569 = vmatprep.subr.mxu0 0.0
        %1570 = vmatpush1.msra.mxu0 0.0
        %1571 = vmatprep.subr.mxu0 0.0
        %1572 = vmatpush1.msra.mxu0 0.0
        %1573 = vmatprep.subr.mxu0 0.0
        %1574 = vmatpush1.msra.mxu0 0.0
        %1575 = vmatprep.subr.mxu0 0.0
        %1576 = vmatpush1.msra.mxu0 0.0
        %1577 = vmatprep.subr.mxu0 0.0
        %1578 = vmatpush1.msra.mxu0 0.0
        %1579 = vmatprep.subr.mxu0 0.0
        %1580 = vmatpush1.msra.mxu0 0.0
        %1581 = vmatprep.subr.mxu0 0.0
        %1582 = vmatpush1.msra.mxu0 0.0
        %1583 = vmatprep.subr.mxu0 0.0
        %1584 = vmatpush1.msra.mxu0 0.0
        %1585 = vmatprep.subr.mxu0 0.0
        %1586 = vmatpush1.msra.mxu0 0.0
        %1587 = vmatprep.subr.mxu0 0.0
        %1588 = vmatpush1.msra.mxu0 0.0
        %1589 = vmatprep.subr.mxu0 0.0
        %1590 = vmatpush1.msra.mxu0 0.0
        %1591 = vmatprep.subr.mxu0 0.0
        %1592 = vmatpush1.msra.mxu0 0.0
        %1593 = vmatprep.subr.mxu0 0.0
        %1594 = vmatpush1.msra.mxu0 0.0
        %1595 = vmatprep.subr.mxu0 0.0
        %1596 = vmatpush1.msra.mxu0 0.0
        %1597 = vmatprep.subr.mxu0 0.0
        %1598 = vmatpush1.msra.mxu0 0.0
        %1599 = vmatprep.subr.mxu0 0.0
        %1600 = vmatpush1.msra.mxu0 0.0
        %1601 = vmatprep.subr.mxu0 0.0
        %1602 = vmatpush1.msra.mxu0 0.0
        %1603 = vmatprep.subr.mxu0 0.0
        %1604 = vmatpush1.msra.mxu0 0.0
        %1605 = vmatprep.subr.mxu0 0.0
        %1606 = vmatpush1.msra.mxu0 0.0
        %1607 = vmatprep.mubr.f32.mxu0 0.0
        %1608 = vmatmul.mubr.f32.gmra.mrb[0].mxu0 %v1517
        %v1609 = vpop.f32.mrb[0].mxu0
        %v1610 = vadd.f32 0.0, %v1609
        %v1611 = vpop.f32.mrb[0].mxu0
        %1612 = vmatprep.mubr.f32.mxu0 0.0
        %1613 = vmatmul.mubr.f32.gmra.mrb[0].mxu0 %v1520
        %v1614 = vpop.f32.mrb[0].mxu0
        %v1615 = vadd.f32 0.0, %v1614
        %v1616 = vpop.f32.mrb[0].mxu0
        %1617 = vmatprep.mubr.f32.mxu0 0.0
        %1618 = vmatmul.mubr.f32.gmra.mrb[0].mxu0 %v1523
        %v1619 = vpop.f32.mrb[0].mxu0
        %v1620 = vadd.f32 0.0, %v1619
        %v1621 = vpop.f32.mrb[0].mxu0
        %1622 = vmatprep.mubr.f32.mxu0 0.0
        %1623 = vmatmul.mubr.f32.gmra.mrb[0].mxu0 %v1526
        %v1624 = vpop.f32.mrb[0].mxu0
        %v1625 = vadd.f32 0.0, %v1624
        %v1626 = vpop.f32.mrb[0].mxu0
        %1627 = vmatprep.mubr.f32.mxu0 0.0
        %1628 = vmatmul.mubr.f32.gmra.mrb[0].mxu0 %v1529
        %v1629 = vpop.f32.mrb[0].mxu0
        %v1630 = vadd.f32 0.0, %v1629
        %v1631 = vpop.f32.mrb[0].mxu0
        %1632 = vmatprep.mubr.f32.mxu0 0.0
        %1633 = vmatmul.mubr.f32.gmra.mrb[0].mxu0 %v1532
        %v1634 = vpop.f32.mrb[0].mxu0
        %v1635 = vadd.f32 0.0, %v1634
        %v1636 = vpop.f32.mrb[0].mxu0
        %1637 = vmatprep.mubr.f32.mxu0 0.0
        %1638 = vmatmul.mubr.f32.gmra.mrb[0].mxu0 %v1535
        %v1639 = vpop.f32.mrb[0].mxu0
        %v1640 = vadd.f32 0.0, %v1639
        %v1641 = vpop.f32.mrb[0].mxu0
        %1642 = vmatprep.mubr.f32.mxu0 0.0
        %1643 = vmatmul.mubr.f32.gmra.mrb[0].mxu0 %v1538
        %v1644 = vpop.f32.mrb[0].mxu0
        %v1645 = vadd.f32 0.0, %v1644
        %v1646 = vpop.f32.mrb[0].mxu0
        %1647 = vdwg.mxu0
        %v1648 = vld [vmem:[#allocation2] sm:$0xff]
        %v1649 = vld [vmem:[#allocation2 + $0x8] sm:$0xff]
        %v1650 = vld [vmem:[#allocation2 + $0x10] sm:$0xff]
        %v1651 = vld [vmem:[#allocation2 + $0x18] sm:$0xff]
        %v1652 = vld [vmem:[#allocation2 + $0x20] sm:$0xff]
        %v1653 = vld [vmem:[#allocation2 + $0x28] sm:$0xff]
        %v1654 = vld [vmem:[#allocation2 + $0x30] sm:$0xff]
        %v1655 = vld [vmem:[#allocation2 + $0x38] sm:$0xff]
        %v1656 = vadd.f32 %v1648, %v1610
        %v1657 = vadd.f32 %v1649, %v1615
        %v1658 = vadd.f32 %v1650, %v1620
        %v1659 = vadd.f32 %v1651, %v1625
        %v1660 = vadd.f32 %v1652, %v1630
        %v1661 = vadd.f32 %v1653, %v1635
        %v1662 = vadd.f32 %v1654, %v1640
        %v1663 = vadd.f32 %v1655, %v1645
        %1664 = vst [vmem:[#allocation2] sm:$0xff] %v1656
        %1665 = vst [vmem:[#allocation2 + $0x8] sm:$0xff] %v1657
        %1666 = vst [vmem:[#allocation2 + $0x10] sm:$0xff] %v1658
        %1667 = vst [vmem:[#allocation2 + $0x18] sm:$0xff] %v1659
        %1668 = vst [vmem:[#allocation2 + $0x20] sm:$0xff] %v1660
        %1669 = vst [vmem:[#allocation2 + $0x28] sm:$0xff] %v1661
        %1670 = vst [vmem:[#allocation2 + $0x30] sm:$0xff] %v1662
        %1671 = vst [vmem:[#allocation2 + $0x38] sm:$0xff] %v1663
        %v1672 = vld [vmem:[#allocation2] sm:$0xff]
        %v1673 = vld [vmem:[#allocation2 + $0x8] sm:$0xff]
        %v1674 = vld [vmem:[#allocation2 + $0x10] sm:$0xff]
        %v1675 = vld [vmem:[#allocation2 + $0x18] sm:$0xff]
        %v1676 = vld [vmem:[#allocation2 + $0x20] sm:$0xff]
        %v1677 = vld [vmem:[#allocation2 + $0x28] sm:$0xff]
        %v1678 = vld [vmem:[#allocation2 + $0x30] sm:$0xff]
        %v1679 = vld [vmem:[#allocation2 + $0x38] sm:$0xff]
        %v1680 = vld [vmem:[%s2] sm:$0x1]
        %v1682 = vlaneseq
        %v1683 = vshrl.u32 %v1682, 7
        %v1684 = vsub.s32 0, %v1683
        %v1685 = vrot.slane %v1680, %v1684
        %v1687 = vadd.f32 %v1672, %v1685
        %v1688 = vadd.f32 %v1673, %v1685
        %v1689 = vadd.f32 %v1674, %v1685
        %v1690 = vadd.f32 %v1675, %v1685
        %v1691 = vadd.f32 %v1676, %v1685
        %v1692 = vadd.f32 %v1677, %v1685
        %v1693 = vadd.f32 %v1678, %v1685
        %v1694 = vadd.f32 %v1679, %v1685
        %v1695 = vmax.f32 %v1687, 0.0
        %v1696 = vmax.f32 %v1688, 0.0
        %v1697 = vmax.f32 %v1689, 0.0
        %v1698 = vmax.f32 %v1690, 0.0
        %v1699 = vmax.f32 %v1691, 0.0
        %v1700 = vmax.f32 %v1692, 0.0
        %v1701 = vmax.f32 %v1693, 0.0
        %v1702 = vmax.f32 %v1694, 0.0
        %1703 = vst [vmem:[%s177] sm:$0xff] %v1695
        %1704 = vst [vmem:[%s177 + $0x8] sm:$0xff] %v1696
        %1705 = vst [vmem:[%s177 + $0x10] sm:$0xff] %v1697
        %1706 = vst [vmem:[%s177 + $0x18] sm:$0xff] %v1698
        %1707 = vst [vmem:[%s177 + $0x20] sm:$0xff] %v1699
        %1708 = vst [vmem:[%s177 + $0x28] sm:$0xff] %v1700
        %1709 = vst [vmem:[%s177 + $0x30] sm:$0xff] %v1701
        %1710 = vst [vmem:[%s177 + $0x38] sm:$0xff] %v1702
        %s1711 = sand.u32 %s107, 1
        %s1712 = scalar_lea.sflag [#allocation4], %s1711
        %s1713 = sand.u32 %s107, 1
        %s1714 = smul.addr %s1713, 64
        %s1715 = scalar_lea.vmem [#allocation3], %s1714
        // Predicated region
        $region33: #{tpu_custom_call.1} parent=31 // pred_check
          %p1716 = pneg %p117
        $region34: #{tpu_custom_call.1} parent=31 // pred_check_branch
          %1718 = sbr.rel (%p1716) target = $region36
        $region35: #{tpu_custom_call.1} parent=31 // pred_region
          %s1719 = smul.u32 8, %s22
          %s1721 = ssub.s32 1024, 1024
          %1722 = vsyncadd %s1712, %s1721
          %s1723 = smul.addr %s21, 32
          %s1724 = sadd.s32 %s1719, %s1723
          %s1725 = smul.addr %s1724, 128
          %s1726 = scalar_lea.hbm %s3, %s1725
          %s1727 = sshll.u32 %s1715, 4
          %s1728 = int_to_ptr.vmem [resolvable:$true] %s1727
          %1733 = dma.vmem_to_hbm [thread:$0]  %s1728, 1024, %s1726, %s1712, 128, 128, 8
        $region36: #{tpu_custom_call.1} parent=31 // pred_fallthru
          _
      $region32: #{tpu_custom_call.1} parent=5 // pred_fallthru
        _
      %p1734 = scmp.le.s32.totalorder 2, %s12
      // Predicated region
      $region37: #{tpu_custom_call.1} parent=5 // pred_check
        %p1735 = pneg %p1734
      $region38: #{tpu_custom_call.1} parent=5 // pred_check_branch
        %1737 = sbr.rel (%p1735) target = $region40
      $region39: #{tpu_custom_call.1} parent=5 // pred_region
        %s1738 = ssub.s32 %s12, 2
        // Predicated region
        $region41: #{tpu_custom_call.1} parent=39 // pred_check
          %p1739 = pneg %p123
        $region42: #{tpu_custom_call.1} parent=39 // pred_check_branch
          %1741 = sbr.rel (%p1739) target = $region44
        $region43: #{tpu_custom_call.1} parent=39 // pred_region
          %s1742 = sand.u32 %s108, 1
          %s1743 = scalar_lea.sflag [#allocation4], %s1742
          %s1744 = sand.u32 %s108, 1
          %s1745 = smul.addr %s1744, 64
          %s1746 = scalar_lea.vmem [#allocation3], %s1745
          %1747 = dma.done %s1743, 1024
        $region44: #{tpu_custom_call.1} parent=39 // pred_fallthru
          _
      $region40: #{tpu_custom_call.1} parent=5 // pred_fallthru
        _
    $region6: #{tpu_custom_call.1} parent=1 // loop_footer
      %s16 = sadd.s32 1, %s12
    $region7: #{tpu_custom_call.1} parent=1 // loop_footer_branch
      %11 = sbr.rel target = $region3
    $region8: #{tpu_custom_call.1} parent=1 // loop_exit
      _
    %1748 = vsyncpa [#allocation4], 1
    %s1749 = scalar_lea.sflag [#allocation4], 1
    %1750 = vsyncpa %s1749, 1

</llo_original>
